<compile_context>
chip_gen: v7x
topology: tpu7x:2x2x1
jax: 0.10.0
libtpu: 0.0.40
codegen_flags: <defaults>
</compile_context>

<pallas_src>
import functools
import math

import jax
import jax.numpy as jnp
from jax import lax
from jax.experimental import pallas as pl
from jax.experimental.pallas import tpu as pltpu


def _layernorm(x, w, b, eps=1e-5):
    mu = jnp.mean(x, axis=-1, keepdims=True)
    var = jnp.mean((x - mu) ** 2, axis=-1, keepdims=True)
    return (x - mu) * lax.rsqrt(var + eps) * w + b


def _gelu_exact(x):
    return 0.5 * x * (1.0 + lax.erf(x * (1.0 / math.sqrt(2.0))))


# --------------------------- fused Block kernel ------------------------------
def _block_kernel(x_ref,
                  ln1w_ref, ln1b_ref,
                  wq_ref, bq_ref, wkv_ref, bkv_ref,
                  wp_ref, bp_ref,
                  ln2w_ref, ln2b_ref,
                  w1_ref, b1_ref, w2_ref, b2_ref,
                  o_ref,
                  k_sc, v_sc,
                  *, n_head, q_tile):
    i = pl.program_id(1)
    C = x_ref.shape[-1]
    D = C // n_head
    bf16 = jnp.bfloat16

    # ---- once per batch: ln1 + fused KV projection over the full sequence ----
    # K/V never touch HBM: head-major relayout happens in-kernel, into VMEM
    # scratch that stays resident for every query tile of this batch.
    @pl.when(i == 0)
    def _():
        xf = x_ref[0].astype(jnp.float32)                     # (T, C)
        hf = _layernorm(xf, ln1w_ref[...], ln1b_ref[...])
        kv = jnp.dot(hf.astype(bf16), wkv_ref[...],
                     preferred_element_type=jnp.float32) + bkv_ref[...]
        for h in range(n_head):                               # (T, 2C) -> (H, T, D) x2
            k_sc[h] = kv[:, h * D:(h + 1) * D].astype(k_sc.dtype)
            v_sc[h] = kv[:, C + h * D:C + (h + 1) * D].astype(v_sc.dtype)

    # ---- per query tile: ln1 + Q (recomputed, no HBM round trip) -------------
    start = pl.multiple_of(i * q_tile, q_tile)
    xq = x_ref[0, pl.ds(start, q_tile), :].astype(jnp.float32)   # (Tq, C)
    hq = _layernorm(xq, ln1w_ref[...], ln1b_ref[...])
    # wq/bq are pre-scaled by 1/sqrt(D) in the wrapper (zero in-kernel cost)
    q = jnp.dot(hq.astype(bf16), wq_ref[...],
                preferred_element_type=jnp.float32) + bq_ref[...]

    # ---- per-head attention, fused with the output projection ----------------
    # mask buffer is all-ones in the PyTorch module -> plain softmax; dropout=id.
    # Processing one head at a time keeps only a (Tq, T) score slab live (vs the
    # full (H, Tq, T) tensor) and the proj is accumulated head-by-head with wp
    # shipped as (H, D, C) -> no concat, no y scratch, no masked per-head stores.
    # TODO(synk): for very long T, add a flash-style KV grid axis with an online
    # softmax accumulator instead of holding full per-batch K/V in VMEM.
    # TODO(synk): on v6e/v7x the exp / p*recip path could run in bf16 (and the
    # MLP weights in fp8 on v7x) if the accuracy budget allows.
    acc = jnp.zeros((q_tile, C), jnp.float32)
    for h in range(n_head):
        q_h = q[:, h * D:(h + 1) * D].astype(bf16)               # (Tq, D)
        s = lax.dot_general(q_h, k_sc[h], (((1,), (1,)), ((), ())),
                            preferred_element_type=jnp.float32)  # (Tq, T)
        s = s - jnp.max(s, axis=-1, keepdims=True)
        p = jnp.exp(s)
        p = p * pl.reciprocal(jnp.sum(p, axis=-1, keepdims=True), approx=True)
        y_h = jnp.dot(p.astype(bf16), v_sc[h],
                      preferred_element_type=jnp.float32)        # (Tq, D)
        acc = acc + jnp.dot(y_h.astype(bf16), wp_ref[h],
                            preferred_element_type=jnp.float32)  # (Tq, C)
    x1 = xq + acc + bp_ref[...]                                  # residual 1

    # ---- ln2 + MLP + residual -------------------------------------------------
    h2 = _layernorm(x1, ln2w_ref[...], ln2b_ref[...])
    m = jnp.dot(h2.astype(bf16), w1_ref[...],
                preferred_element_type=jnp.float32) + b1_ref[...]
    m = _gelu_exact(m)
    m = jnp.dot(m.astype(bf16), w2_ref[...],
                preferred_element_type=jnp.float32) + b2_ref[...]
    o_ref[0] = (x1 + m).astype(o_ref.dtype)                      # residual 2


# --------------------------- one-time weight prep -----------------------------
def prepare_block_params(params, n_head):
    """Hoisted out of the forward path: fused KV weight, 1/sqrt(D) folded into
    the Q slice, bf16 MXU operands, per-head (H,D,C) reshape of the proj."""
    C = params["wq"].shape[0]
    D = C // n_head
    scale = 1.0 / math.sqrt(D)
    f32, bf16 = jnp.float32, jnp.bfloat16
    return dict(
        ln1_w=params["ln1_w"].astype(f32), ln1_b=params["ln1_b"].astype(f32),
        ln2_w=params["ln2_w"].astype(f32), ln2_b=params["ln2_b"].astype(f32),
        wq=(params["wq"] * scale).astype(bf16),
        bq=(params["bq"] * scale).astype(f32),
        wkv=jnp.concatenate([params["wk"], params["wv"]], axis=1).astype(bf16),
        bkv=jnp.concatenate([params["bk"], params["bv"]], axis=1).astype(f32),
        wp=params["wp"].reshape(n_head, D, C).astype(bf16),
        bp=params["bp"].astype(f32),
        w1=params["w1"].astype(bf16), b1=params["b1"].astype(f32),
        w2=params["w2"].astype(bf16), b2=params["b2"].astype(f32),
    )


def _device_defaults():
    """(q_tile, vmem_limit_bytes) tuned per TPU generation; safe fallback."""
    try:
        kind = jax.devices()[0].device_kind.lower()
    except Exception:
        kind = ""
    mib = 1024 * 1024
    if "v5" in kind:                    # v5e/v5p: 128x128 MXU, 128 MiB VMEM
        return 128, 96 * mib
    if "v6" in kind:                    # v6e: 256-wide MXU, 128 MiB VMEM
        return 256, 96 * mib
    if "7x" in kind or "v7" in kind:    # v7x: only 64 MiB VMEM -> keep headroom
        return 256, 40 * mib
    return 256, 48 * mib


# --------------------------- wrapper -------------------------------------------
def transformer_block(x, prep, n_head, *, q_tile=None, vmem_limit_bytes=None):
    B, T, C = x.shape
    assert C % n_head == 0

    dq, dv = _device_defaults()
    if q_tile is None:
        q_tile = min(T, dq)
    if vmem_limit_bytes is None:
        vmem_limit_bytes = dv
    if T % q_tile != 0:
        q_tile = T                       # fall back to one tile per batch

    kernel = functools.partial(_block_kernel, n_head=n_head, q_tile=q_tile)
    # Whole-array, single-copy VMEM residency for every weight/bias/LN operand
    # (no double-buffering -> roughly halves the weight VMEM footprint).
    resident = pl.BlockSpec(memory_space=pltpu.MemorySpace.VMEM)

    return pl.pallas_call(
        kernel,
        out_shape=jax.ShapeDtypeStruct((B, T, C), x.dtype),
        grid_spec=pltpu.PrefetchScalarGridSpec(
            num_scalar_prefetch=0,
            grid=(B, T // q_tile),
            in_specs=[
                # x: full per-batch sequence; block index constant across the
                # query-tile axis -> DMA'd once per batch, stays in VMEM.
                pl.BlockSpec((1, T, C), lambda b, i: (b, 0, 0)),
                resident,   # ln1_w
                resident,   # ln1_b
                resident,   # wq   (pre-scaled, bf16)
                resident,   # bq   (pre-scaled, f32)
                resident,   # wkv  (C, 2C) bf16
                resident,   # bkv  (1, 2C) f32
                resident,   # wp   (H, D, C) bf16
                resident,   # bp
                resident,   # ln2_w
                resident,   # ln2_b
                resident,   # w1   (C, 4C) bf16
                resident,   # b1
                resident,   # w2   (4C, C) bf16
                resident,   # b2
            ],
            out_specs=pl.BlockSpec((1, q_tile, C), lambda b, i: (b, i, 0)),
            scratch_shapes=[
                pltpu.VMEM((n_head, T, C // n_head), jnp.bfloat16),  # K (head-major)
                pltpu.VMEM((n_head, T, C // n_head), jnp.bfloat16),  # V (head-major)
            ],
        ),
        compiler_params=pltpu.CompilerParams(
            # Batches shard the megacore; the query-tile axis carries the K/V
            # scratch state, so it must stay "arbitrary" (also avoids re-DMAing
            # the per-batch x/K-V when the 2 TCs would split the inner axis).
            dimension_semantics=("parallel", "arbitrary"),
            vmem_limit_bytes=vmem_limit_bytes),
    )(x, prep["ln1_w"], prep["ln1_b"], prep["wq"], prep["bq"],
      prep["wkv"], prep["bkv"], prep["wp"], prep["bp"],
      prep["ln2_w"], prep["ln2_b"], prep["w1"], prep["b1"],
      prep["w2"], prep["b2"])


# --------------------------- pure-JAX reference --------------------------------
def block_reference(x, p, n_head):
    """Plain-JAX f32 reference mirroring the PyTorch forward (eval mode)."""
    B, T, C = x.shape
    D = C // n_head

    def ln(v, w, b):
        mu = jnp.mean(v, -1, keepdims=True)
        var = jnp.mean((v - mu) ** 2, -1, keepdims=True)
        return (v - mu) / jnp.sqrt(var + 1e-5) * w + b

    h = ln(x, p["ln1_w"], p["ln1_b"])
    q = h @ p["wq"] + p["bq"]
    k = h @ p["wk"] + p["bk"]
    v = h @ p["wv"] + p["bv"]
    q = q.reshape(B, T, n_head, D).transpose(0, 2, 1, 3)
    k = k.reshape(B, T, n_head, D).transpose(0, 2, 1, 3)
    v = v.reshape(B, T, n_head, D).transpose(0, 2, 1, 3)
    att = (q @ jnp.swapaxes(k, -2, -1)) / math.sqrt(D)
    att = jax.nn.softmax(att, axis=-1)
    y = (att @ v).transpose(0, 2, 1, 3).reshape(B, T, C)
    x = x + y @ p["wp"] + p["bp"]
    h2 = ln(x, p["ln2_w"], p["ln2_b"])
    m = jax.nn.gelu(h2 @ p["w1"] + p["b1"], approximate=False)
    m = m @ p["w2"] + p["b2"]
    return x + m


def init_params(key, n_embd):
    ks = jax.random.split(key, 12)

    def lin(kw, kb, fan_in, fan_out):
        w = jax.random.normal(kw, (fan_in, fan_out), jnp.float32) * 0.02
        b = jax.random.normal(kb, (1, fan_out), jnp.float32) * 0.02
        return w, b

    wq, bq = lin(ks[0], ks[1], n_embd, n_embd)
    wk, bk = lin(ks[2], ks[3], n_embd, n_embd)
    wv, bv = lin(ks[4], ks[5], n_embd, n_embd)
    wp, bp = lin(ks[6], ks[7], n_embd, n_embd)
    w1, b1 = lin(ks[8], ks[9], n_embd, 4 * n_embd)
    w2, b2 = lin(ks[10], ks[11], 4 * n_embd, n_embd)
    return {
        "ln1_w": jnp.ones((1, n_embd), jnp.float32),
        "ln1_b": jnp.zeros((1, n_embd), jnp.float32),
        "ln2_w": jnp.ones((1, n_embd), jnp.float32),
        "ln2_b": jnp.zeros((1, n_embd), jnp.float32),
        "wq": wq, "bq": bq, "wk": wk, "bk": bk, "wv": wv, "bv": bv,
        "wp": wp, "bp": bp, "w1": w1, "b1": b1, "w2": w2, "b2": b2,
    }


if __name__ == "__main__":
    B, T, C, n_head = 2, 8, 32, 4     # block_size >= T; n_embd % n_head == 0
    key = jax.random.PRNGKey(0)
    kx, kp = jax.random.split(key)
    x = jax.random.normal(kx, (B, T, C), jnp.float32)
    params = init_params(kp, C)

    prep = prepare_block_params(params, n_head)   # one-time weight prep (hoisted)
    out = transformer_block(x, prep, n_head)
    out = jax.block_until_ready(out)

    ref = block_reference(x, params, n_head)
    assert out.shape == (B, T, C)
    max_err = float(jnp.max(jnp.abs(out - ref)))
    # tolerance relaxed vs pure-f32 because MXU operands are bf16 + approx recip
    assert max_err < 2e-2, f"mismatch vs reference: max abs err {max_err}"
    print("KERNEL_OK")
</pallas_src>

<mosaic_0001>
module attributes {stable_mosaic.version = 11 : i64} {
  func.func @_block_kernel(%arg0: i32, %arg1: i32, %arg2: memref<1x8x32xf32, #tpu.memory_space<vmem>>, %arg3: memref<1x32xf32, #tpu.memory_space<vmem>>, %arg4: memref<1x32xf32, #tpu.memory_space<vmem>>, %arg5: memref<32x32xbf16, #tpu.memory_space<vmem>>, %arg6: memref<1x32xf32, #tpu.memory_space<vmem>>, %arg7: memref<32x64xbf16, #tpu.memory_space<vmem>>, %arg8: memref<1x64xf32, #tpu.memory_space<vmem>>, %arg9: memref<4x8x32xbf16, #tpu.memory_space<vmem>>, %arg10: memref<1x32xf32, #tpu.memory_space<vmem>>, %arg11: memref<1x32xf32, #tpu.memory_space<vmem>>, %arg12: memref<1x32xf32, #tpu.memory_space<vmem>>, %arg13: memref<32x128xbf16, #tpu.memory_space<vmem>>, %arg14: memref<1x128xf32, #tpu.memory_space<vmem>>, %arg15: memref<128x32xbf16, #tpu.memory_space<vmem>>, %arg16: memref<1x32xf32, #tpu.memory_space<vmem>>, %arg17: memref<1x8x32xf32, #tpu.memory_space<vmem>>, %arg18: memref<4x8x8xbf16, #tpu.memory_space<vmem>>, %arg19: memref<4x8x8xbf16, #tpu.memory_space<vmem>>) attributes {dimension_semantics = [#tpu.dimension_semantics<parallel>, #tpu.dimension_semantics<arbitrary>], iteration_bounds = array<i64: 2, 1>, scalar_prefetch = 0 : i64, scratch_operands = 2 : i64, tpu.core_type = #tpu.core_type<tc>, window_params = [{transform_indices = @transform_0, window_bounds = array<i64: 1, 8, 32>}, {pipeline_mode = #tpu.pipeline_mode<synchronous>, transform_indices = @transform_1, window_bounds = array<i64: 1, 32>}, {pipeline_mode = #tpu.pipeline_mode<synchronous>, transform_indices = @transform_2, window_bounds = array<i64: 1, 32>}, {pipeline_mode = #tpu.pipeline_mode<synchronous>, transform_indices = @transform_3, window_bounds = array<i64: 32, 32>}, {pipeline_mode = #tpu.pipeline_mode<synchronous>, transform_indices = @transform_4, window_bounds = array<i64: 1, 32>}, {pipeline_mode = #tpu.pipeline_mode<synchronous>, transform_indices = @transform_5, window_bounds = array<i64: 32, 64>}, {pipeline_mode = #tpu.pipeline_mode<synchronous>, transform_indices = @transform_6, window_bounds = array<i64: 1, 64>}, {pipeline_mode = #tpu.pipeline_mode<synchronous>, transform_indices = @transform_7, window_bounds = array<i64: 4, 8, 32>}, {pipeline_mode = #tpu.pipeline_mode<synchronous>, transform_indices = @transform_8, window_bounds = array<i64: 1, 32>}, {pipeline_mode = #tpu.pipeline_mode<synchronous>, transform_indices = @transform_9, window_bounds = array<i64: 1, 32>}, {pipeline_mode = #tpu.pipeline_mode<synchronous>, transform_indices = @transform_10, window_bounds = array<i64: 1, 32>}, {pipeline_mode = #tpu.pipeline_mode<synchronous>, transform_indices = @transform_11, window_bounds = array<i64: 32, 128>}, {pipeline_mode = #tpu.pipeline_mode<synchronous>, transform_indices = @transform_12, window_bounds = array<i64: 1, 128>}, {pipeline_mode = #tpu.pipeline_mode<synchronous>, transform_indices = @transform_13, window_bounds = array<i64: 128, 32>}, {pipeline_mode = #tpu.pipeline_mode<synchronous>, transform_indices = @transform_14, window_bounds = array<i64: 1, 32>}, {transform_indices = @transform_15, window_bounds = array<i64: 1, 8, 32>}]} {
    %c0_i32 = arith.constant 0 : i32
    %0 = arith.cmpi eq, %arg1, %c0_i32 : i32
    %1 = arith.extui %0 : i1 to i32
    %c0_i32_0 = arith.constant 0 : i32
    %2 = arith.cmpi ne, %1, %c0_i32_0 : i32
    scf.if %2 {
      %c0_96 = arith.constant 0 : index
      %c0_97 = arith.constant 0 : index
      %c0_98 = arith.constant 0 : index
      %187 = vector.load %arg2[%c0_96, %c0_97, %c0_98] : memref<1x8x32xf32, #tpu.memory_space<vmem>>, vector<1x8x32xf32>
      %188 = vector.shape_cast %187 : vector<1x8x32xf32> to vector<8x32xf32>
      %c0_99 = arith.constant 0 : index
      %c0_100 = arith.constant 0 : index
      %189 = vector.load %arg3[%c0_99, %c0_100] : memref<1x32xf32, #tpu.memory_space<vmem>>, vector<1x32xf32>
      %c0_101 = arith.constant 0 : index
      %c0_102 = arith.constant 0 : index
      %190 = vector.load %arg4[%c0_101, %c0_102] : memref<1x32xf32, #tpu.memory_space<vmem>>, vector<1x32xf32>
      %cst_103 = arith.constant dense<0.000000e+00> : vector<8xf32>
      %191 = vector.multi_reduction <add>, %188, %cst_103 [1] : vector<8x32xf32> to vector<8xf32>
      %192 = vector.shape_cast %191 : vector<8xf32> to vector<8x1xf32>
      %cst_104 = arith.constant 3.200000e+01 : f32
      %193 = vector.broadcast %cst_104 : f32 to vector<8x1xf32>
      %194 = arith.divf %192, %193 : vector<8x1xf32>
      %195 = vector.broadcast %194 : vector<8x1xf32> to vector<8x32xf32>
      %196 = arith.subf %188, %195 : vector<8x32xf32>
      %197 = arith.mulf %196, %196 : vector<8x32xf32>
      %cst_105 = arith.constant dense<0.000000e+00> : vector<8xf32>
      %198 = vector.multi_reduction <add>, %197, %cst_105 [1] : vector<8x32xf32> to vector<8xf32>
      %199 = vector.shape_cast %198 : vector<8xf32> to vector<8x1xf32>
      %cst_106 = arith.constant 3.200000e+01 : f32
      %200 = vector.broadcast %cst_106 : f32 to vector<8x1xf32>
      %201 = arith.divf %199, %200 : vector<8x1xf32>
      %202 = vector.broadcast %194 : vector<8x1xf32> to vector<8x32xf32>
      %203 = arith.subf %188, %202 : vector<8x32xf32>
      %cst_107 = arith.constant 9.99999974E-6 : f32
      %204 = vector.broadcast %cst_107 : f32 to vector<8x1xf32>
      %205 = arith.addf %201, %204 : vector<8x1xf32>
      %206 = math.rsqrt %205 : vector<8x1xf32>
      %207 = vector.broadcast %206 : vector<8x1xf32> to vector<8x32xf32>
      %208 = arith.mulf %203, %207 : vector<8x32xf32>
      %209 = vector.broadcast %189 : vector<1x32xf32> to vector<8x32xf32>
      %210 = arith.mulf %208, %209 : vector<8x32xf32>
      %211 = vector.broadcast %190 : vector<1x32xf32> to vector<8x32xf32>
      %212 = arith.addf %210, %211 : vector<8x32xf32>
      %213 = arith.truncf %212 : vector<8x32xf32> to vector<8x32xbf16>
      %c0_108 = arith.constant 0 : index
      %c0_109 = arith.constant 0 : index
      %214 = vector.load %arg7[%c0_108, %c0_109] : memref<32x64xbf16, #tpu.memory_space<vmem>>, vector<32x64xbf16>
      %cst_110 = arith.constant dense<0.000000e+00> : vector<8x64xf32>
      %215 = tpu.matmul %213, %214, %cst_110 {dimension_numbers = #tpu.dot_dimension_numbers<[1], [0], [0], [1], [0, 0, 1, 1], [], []>} : vector<8x32xbf16>, vector<32x64xbf16>, vector<8x64xf32> -> vector<8x64xf32>
      %c0_111 = arith.constant 0 : index
      %c0_112 = arith.constant 0 : index
      %216 = vector.load %arg8[%c0_111, %c0_112] : memref<1x64xf32, #tpu.memory_space<vmem>>, vector<1x64xf32>
      %217 = vector.broadcast %216 : vector<1x64xf32> to vector<8x64xf32>
      %218 = arith.addf %215, %217 : vector<8x64xf32>
      %219 = vector.extract_strided_slice %218 {offsets = [0, 0], sizes = [8, 8], strides = [1, 1]} : vector<8x64xf32> to vector<8x8xf32>
      %220 = arith.truncf %219 : vector<8x8xf32> to vector<8x8xbf16>
      %c0_113 = arith.constant 0 : index
      %c0_114 = arith.constant 0 : index
      %c0_115 = arith.constant 0 : index
      %221 = vector.load %arg18[%c0_113, %c0_114, %c0_115] : memref<4x8x8xbf16, #tpu.memory_space<vmem>>, vector<1x8x8xbf16>
      %222 = vector.shape_cast %221 : vector<1x8x8xbf16> to vector<8x8xbf16>
      %223 = vector.shape_cast %220 : vector<8x8xbf16> to vector<1x8x8xbf16>
      tpu.vector_store %arg18[%c0_113, %c0_114, %c0_115], %223 {strides = array<i32>} : memref<4x8x8xbf16, #tpu.memory_space<vmem>>, vector<1x8x8xbf16>,
      %224 = vector.extract_strided_slice %218 {offsets = [0, 32], sizes = [8, 8], strides = [1, 1]} : vector<8x64xf32> to vector<8x8xf32>
      %225 = arith.truncf %224 : vector<8x8xf32> to vector<8x8xbf16>
      %c0_116 = arith.constant 0 : index
      %c0_117 = arith.constant 0 : index
      %c0_118 = arith.constant 0 : index
      %226 = vector.load %arg19[%c0_116, %c0_117, %c0_118] : memref<4x8x8xbf16, #tpu.memory_space<vmem>>, vector<1x8x8xbf16>
      %227 = vector.shape_cast %226 : vector<1x8x8xbf16> to vector<8x8xbf16>
      %228 = vector.shape_cast %225 : vector<8x8xbf16> to vector<1x8x8xbf16>
      tpu.vector_store %arg19[%c0_116, %c0_117, %c0_118], %228 {strides = array<i32>} : memref<4x8x8xbf16, #tpu.memory_space<vmem>>, vector<1x8x8xbf16>,
      %229 = vector.extract_strided_slice %218 {offsets = [0, 8], sizes = [8, 8], strides = [1, 1]} : vector<8x64xf32> to vector<8x8xf32>
      %230 = arith.truncf %229 : vector<8x8xf32> to vector<8x8xbf16>
      %c1_119 = arith.constant 1 : index
      %c0_120 = arith.constant 0 : index
      %c0_121 = arith.constant 0 : index
      %231 = vector.load %arg18[%c1_119, %c0_120, %c0_121] : memref<4x8x8xbf16, #tpu.memory_space<vmem>>, vector<1x8x8xbf16>
      %232 = vector.shape_cast %231 : vector<1x8x8xbf16> to vector<8x8xbf16>
      %233 = vector.shape_cast %230 : vector<8x8xbf16> to vector<1x8x8xbf16>
      tpu.vector_store %arg18[%c1_119, %c0_120, %c0_121], %233 {strides = array<i32>} : memref<4x8x8xbf16, #tpu.memory_space<vmem>>, vector<1x8x8xbf16>,
      %234 = vector.extract_strided_slice %218 {offsets = [0, 40], sizes = [8, 8], strides = [1, 1]} : vector<8x64xf32> to vector<8x8xf32>
      %235 = arith.truncf %234 : vector<8x8xf32> to vector<8x8xbf16>
      %c1_122 = arith.constant 1 : index
      %c0_123 = arith.constant 0 : index
      %c0_124 = arith.constant 0 : index
      %236 = vector.load %arg19[%c1_122, %c0_123, %c0_124] : memref<4x8x8xbf16, #tpu.memory_space<vmem>>, vector<1x8x8xbf16>
      %237 = vector.shape_cast %236 : vector<1x8x8xbf16> to vector<8x8xbf16>
      %238 = vector.shape_cast %235 : vector<8x8xbf16> to vector<1x8x8xbf16>
      tpu.vector_store %arg19[%c1_122, %c0_123, %c0_124], %238 {strides = array<i32>} : memref<4x8x8xbf16, #tpu.memory_space<vmem>>, vector<1x8x8xbf16>,
      %239 = vector.extract_strided_slice %218 {offsets = [0, 16], sizes = [8, 8], strides = [1, 1]} : vector<8x64xf32> to vector<8x8xf32>
      %240 = arith.truncf %239 : vector<8x8xf32> to vector<8x8xbf16>
      %c2_125 = arith.constant 2 : index
      %c0_126 = arith.constant 0 : index
      %c0_127 = arith.constant 0 : index
      %241 = vector.load %arg18[%c2_125, %c0_126, %c0_127] : memref<4x8x8xbf16, #tpu.memory_space<vmem>>, vector<1x8x8xbf16>
      %242 = vector.shape_cast %241 : vector<1x8x8xbf16> to vector<8x8xbf16>
      %243 = vector.shape_cast %240 : vector<8x8xbf16> to vector<1x8x8xbf16>
      tpu.vector_store %arg18[%c2_125, %c0_126, %c0_127], %243 {strides = array<i32>} : memref<4x8x8xbf16, #tpu.memory_space<vmem>>, vector<1x8x8xbf16>,
      %244 = vector.extract_strided_slice %218 {offsets = [0, 48], sizes = [8, 8], strides = [1, 1]} : vector<8x64xf32> to vector<8x8xf32>
      %245 = arith.truncf %244 : vector<8x8xf32> to vector<8x8xbf16>
      %c2_128 = arith.constant 2 : index
      %c0_129 = arith.constant 0 : index
      %c0_130 = arith.constant 0 : index
      %246 = vector.load %arg19[%c2_128, %c0_129, %c0_130] : memref<4x8x8xbf16, #tpu.memory_space<vmem>>, vector<1x8x8xbf16>
      %247 = vector.shape_cast %246 : vector<1x8x8xbf16> to vector<8x8xbf16>
      %248 = vector.shape_cast %245 : vector<8x8xbf16> to vector<1x8x8xbf16>
      tpu.vector_store %arg19[%c2_128, %c0_129, %c0_130], %248 {strides = array<i32>} : memref<4x8x8xbf16, #tpu.memory_space<vmem>>, vector<1x8x8xbf16>,
      %249 = vector.extract_strided_slice %218 {offsets = [0, 24], sizes = [8, 8], strides = [1, 1]} : vector<8x64xf32> to vector<8x8xf32>
      %250 = arith.truncf %249 : vector<8x8xf32> to vector<8x8xbf16>
      %c3_131 = arith.constant 3 : index
      %c0_132 = arith.constant 0 : index
      %c0_133 = arith.constant 0 : index
      %251 = vector.load %arg18[%c3_131, %c0_132, %c0_133] : memref<4x8x8xbf16, #tpu.memory_space<vmem>>, vector<1x8x8xbf16>
      %252 = vector.shape_cast %251 : vector<1x8x8xbf16> to vector<8x8xbf16>
      %253 = vector.shape_cast %250 : vector<8x8xbf16> to vector<1x8x8xbf16>
      tpu.vector_store %arg18[%c3_131, %c0_132, %c0_133], %253 {strides = array<i32>} : memref<4x8x8xbf16, #tpu.memory_space<vmem>>, vector<1x8x8xbf16>,
      %254 = vector.extract_strided_slice %218 {offsets = [0, 56], sizes = [8, 8], strides = [1, 1]} : vector<8x64xf32> to vector<8x8xf32>
      %255 = arith.truncf %254 : vector<8x8xf32> to vector<8x8xbf16>
      %c3_134 = arith.constant 3 : index
      %c0_135 = arith.constant 0 : index
      %c0_136 = arith.constant 0 : index
      %256 = vector.load %arg19[%c3_134, %c0_135, %c0_136] : memref<4x8x8xbf16, #tpu.memory_space<vmem>>, vector<1x8x8xbf16>
      %257 = vector.shape_cast %256 : vector<1x8x8xbf16> to vector<8x8xbf16>
      %258 = vector.shape_cast %255 : vector<8x8xbf16> to vector<1x8x8xbf16>
      tpu.vector_store %arg19[%c3_134, %c0_135, %c0_136], %258 {strides = array<i32>} : memref<4x8x8xbf16, #tpu.memory_space<vmem>>, vector<1x8x8xbf16>,
    } else {
    }
    %c8_i32 = arith.constant 8 : i32
    %3 = arith.muli %arg1, %c8_i32 : i32
    %4 = tpu.assume_multiple %3, 8 : i32
    %c0 = arith.constant 0 : index
    %5 = arith.index_cast %4 : i32 to index
    %c0_1 = arith.constant 0 : index
    %6 = vector.load %arg2[%c0, %5, %c0_1] : memref<1x8x32xf32, #tpu.memory_space<vmem>>, vector<1x8x32xf32>
    %7 = vector.shape_cast %6 : vector<1x8x32xf32> to vector<8x32xf32>
    %c0_2 = arith.constant 0 : index
    %c0_3 = arith.constant 0 : index
    %8 = vector.load %arg3[%c0_2, %c0_3] : memref<1x32xf32, #tpu.memory_space<vmem>>, vector<1x32xf32>
    %c0_4 = arith.constant 0 : index
    %c0_5 = arith.constant 0 : index
    %9 = vector.load %arg4[%c0_4, %c0_5] : memref<1x32xf32, #tpu.memory_space<vmem>>, vector<1x32xf32>
    %cst = arith.constant dense<0.000000e+00> : vector<8xf32>
    %10 = vector.multi_reduction <add>, %7, %cst [1] : vector<8x32xf32> to vector<8xf32>
    %11 = vector.shape_cast %10 : vector<8xf32> to vector<8x1xf32>
    %cst_6 = arith.constant 3.200000e+01 : f32
    %12 = vector.broadcast %cst_6 : f32 to vector<8x1xf32>
    %13 = arith.divf %11, %12 : vector<8x1xf32>
    %14 = vector.broadcast %13 : vector<8x1xf32> to vector<8x32xf32>
    %15 = arith.subf %7, %14 : vector<8x32xf32>
    %16 = arith.mulf %15, %15 : vector<8x32xf32>
    %cst_7 = arith.constant dense<0.000000e+00> : vector<8xf32>
    %17 = vector.multi_reduction <add>, %16, %cst_7 [1] : vector<8x32xf32> to vector<8xf32>
    %18 = vector.shape_cast %17 : vector<8xf32> to vector<8x1xf32>
    %cst_8 = arith.constant 3.200000e+01 : f32
    %19 = vector.broadcast %cst_8 : f32 to vector<8x1xf32>
    %20 = arith.divf %18, %19 : vector<8x1xf32>
    %21 = vector.broadcast %13 : vector<8x1xf32> to vector<8x32xf32>
    %22 = arith.subf %7, %21 : vector<8x32xf32>
    %cst_9 = arith.constant 9.99999974E-6 : f32
    %23 = vector.broadcast %cst_9 : f32 to vector<8x1xf32>
    %24 = arith.addf %20, %23 : vector<8x1xf32>
    %25 = math.rsqrt %24 : vector<8x1xf32>
    %26 = vector.broadcast %25 : vector<8x1xf32> to vector<8x32xf32>
    %27 = arith.mulf %22, %26 : vector<8x32xf32>
    %28 = vector.broadcast %8 : vector<1x32xf32> to vector<8x32xf32>
    %29 = arith.mulf %27, %28 : vector<8x32xf32>
    %30 = vector.broadcast %9 : vector<1x32xf32> to vector<8x32xf32>
    %31 = arith.addf %29, %30 : vector<8x32xf32>
    %32 = arith.truncf %31 : vector<8x32xf32> to vector<8x32xbf16>
    %c0_10 = arith.constant 0 : index
    %c0_11 = arith.constant 0 : index
    %33 = vector.load %arg5[%c0_10, %c0_11] : memref<32x32xbf16, #tpu.memory_space<vmem>>, vector<32x32xbf16>
    %cst_12 = arith.constant dense<0.000000e+00> : vector<8x32xf32>
    %34 = tpu.matmul %32, %33, %cst_12 {dimension_numbers = #tpu.dot_dimension_numbers<[1], [0], [0], [1], [0, 0, 1, 1], [], []>} : vector<8x32xbf16>, vector<32x32xbf16>, vector<8x32xf32> -> vector<8x32xf32>
    %c0_13 = arith.constant 0 : index
    %c0_14 = arith.constant 0 : index
    %35 = vector.load %arg6[%c0_13, %c0_14] : memref<1x32xf32, #tpu.memory_space<vmem>>, vector<1x32xf32>
    %36 = vector.broadcast %35 : vector<1x32xf32> to vector<8x32xf32>
    %37 = arith.addf %34, %36 : vector<8x32xf32>
    %cst_15 = arith.constant 0.000000e+00 : f32
    %38 = vector.broadcast %cst_15 : f32 to vector<8x32xf32>
    %39 = vector.extract_strided_slice %37 {offsets = [0, 0], sizes = [8, 8], strides = [1, 1]} : vector<8x32xf32> to vector<8x8xf32>
    %40 = arith.truncf %39 : vector<8x8xf32> to vector<8x8xbf16>
    %c0_16 = arith.constant 0 : index
    %c0_17 = arith.constant 0 : index
    %c0_18 = arith.constant 0 : index
    %41 = vector.load %arg18[%c0_16, %c0_17, %c0_18] : memref<4x8x8xbf16, #tpu.memory_space<vmem>>, vector<1x8x8xbf16>
    %42 = vector.shape_cast %41 : vector<1x8x8xbf16> to vector<8x8xbf16>
    %cst_19 = arith.constant dense<0.000000e+00> : vector<8x8xf32>
    %43 = tpu.matmul %40, %42, %cst_19 {dimension_numbers = #tpu.dot_dimension_numbers<[1], [1], [0], [0], [0, 0, 1, 0], [], []>} : vector<8x8xbf16>, vector<8x8xbf16>, vector<8x8xf32> -> vector<8x8xf32>
    %cst_20 = arith.constant dense<0xFF800000> : vector<8xf32>
    %44 = vector.multi_reduction <maximumf>, %43, %cst_20 [1] : vector<8x8xf32> to vector<8xf32>
    %45 = vector.shape_cast %44 : vector<8xf32> to vector<8x1xf32>
    %46 = vector.broadcast %45 : vector<8x1xf32> to vector<8x8xf32>
    %47 = arith.subf %43, %46 : vector<8x8xf32>
    %48 = math.exp %47 : vector<8x8xf32>
    %cst_21 = arith.constant dense<0.000000e+00> : vector<8xf32>
    %49 = vector.multi_reduction <add>, %48, %cst_21 [1] : vector<8x8xf32> to vector<8xf32>
    %50 = vector.shape_cast %49 : vector<8xf32> to vector<8x1xf32>
    %51 = tpu.reciprocal %50 {approx = true} : vector<8x1xf32> -> vector<8x1xf32>
    %52 = vector.broadcast %51 : vector<8x1xf32> to vector<8x8xf32>
    %53 = arith.mulf %48, %52 : vector<8x8xf32>
    %54 = arith.truncf %53 : vector<8x8xf32> to vector<8x8xbf16>
    %c0_22 = arith.constant 0 : index
    %c0_23 = arith.constant 0 : index
    %c0_24 = arith.constant 0 : index
    %55 = vector.load %arg19[%c0_22, %c0_23, %c0_24] : memref<4x8x8xbf16, #tpu.memory_space<vmem>>, vector<1x8x8xbf16>
    %56 = vector.shape_cast %55 : vector<1x8x8xbf16> to vector<8x8xbf16>
    %cst_25 = arith.constant dense<0.000000e+00> : vector<8x8xf32>
    %57 = tpu.matmul %54, %56, %cst_25 {dimension_numbers = #tpu.dot_dimension_numbers<[1], [0], [0], [1], [0, 0, 1, 1], [], []>} : vector<8x8xbf16>, vector<8x8xbf16>, vector<8x8xf32> -> vector<8x8xf32>
    %58 = arith.truncf %57 : vector<8x8xf32> to vector<8x8xbf16>
    %c0_26 = arith.constant 0 : index
    %c0_27 = arith.constant 0 : index
    %c0_28 = arith.constant 0 : index
    %59 = vector.load %arg9[%c0_26, %c0_27, %c0_28] : memref<4x8x32xbf16, #tpu.memory_space<vmem>>, vector<1x8x32xbf16>
    %60 = vector.shape_cast %59 : vector<1x8x32xbf16> to vector<8x32xbf16>
    %cst_29 = arith.constant dense<0.000000e+00> : vector<8x32xf32>
    %61 = tpu.matmul %58, %60, %cst_29 {dimension_numbers = #tpu.dot_dimension_numbers<[1], [0], [0], [1], [0, 0, 1, 1], [], []>} : vector<8x8xbf16>, vector<8x32xbf16>, vector<8x32xf32> -> vector<8x32xf32>
    %62 = arith.addf %38, %61 : vector<8x32xf32>
    %63 = vector.extract_strided_slice %37 {offsets = [0, 8], sizes = [8, 8], strides = [1, 1]} : vector<8x32xf32> to vector<8x8xf32>
    %64 = arith.truncf %63 : vector<8x8xf32> to vector<8x8xbf16>
    %c1 = arith.constant 1 : index
    %c0_30 = arith.constant 0 : index
    %c0_31 = arith.constant 0 : index
    %65 = vector.load %arg18[%c1, %c0_30, %c0_31] : memref<4x8x8xbf16, #tpu.memory_space<vmem>>, vector<1x8x8xbf16>
    %66 = vector.shape_cast %65 : vector<1x8x8xbf16> to vector<8x8xbf16>
    %cst_32 = arith.constant dense<0.000000e+00> : vector<8x8xf32>
    %67 = tpu.matmul %64, %66, %cst_32 {dimension_numbers = #tpu.dot_dimension_numbers<[1], [1], [0], [0], [0, 0, 1, 0], [], []>} : vector<8x8xbf16>, vector<8x8xbf16>, vector<8x8xf32> -> vector<8x8xf32>
    %cst_33 = arith.constant dense<0xFF800000> : vector<8xf32>
    %68 = vector.multi_reduction <maximumf>, %67, %cst_33 [1] : vector<8x8xf32> to vector<8xf32>
    %69 = vector.shape_cast %68 : vector<8xf32> to vector<8x1xf32>
    %70 = vector.broadcast %69 : vector<8x1xf32> to vector<8x8xf32>
    %71 = arith.subf %67, %70 : vector<8x8xf32>
    %72 = math.exp %71 : vector<8x8xf32>
    %cst_34 = arith.constant dense<0.000000e+00> : vector<8xf32>
    %73 = vector.multi_reduction <add>, %72, %cst_34 [1] : vector<8x8xf32> to vector<8xf32>
    %74 = vector.shape_cast %73 : vector<8xf32> to vector<8x1xf32>
    %75 = tpu.reciprocal %74 {approx = true} : vector<8x1xf32> -> vector<8x1xf32>
    %76 = vector.broadcast %75 : vector<8x1xf32> to vector<8x8xf32>
    %77 = arith.mulf %72, %76 : vector<8x8xf32>
    %78 = arith.truncf %77 : vector<8x8xf32> to vector<8x8xbf16>
    %c1_35 = arith.constant 1 : index
    %c0_36 = arith.constant 0 : index
    %c0_37 = arith.constant 0 : index
    %79 = vector.load %arg19[%c1_35, %c0_36, %c0_37] : memref<4x8x8xbf16, #tpu.memory_space<vmem>>, vector<1x8x8xbf16>
    %80 = vector.shape_cast %79 : vector<1x8x8xbf16> to vector<8x8xbf16>
    %cst_38 = arith.constant dense<0.000000e+00> : vector<8x8xf32>
    %81 = tpu.matmul %78, %80, %cst_38 {dimension_numbers = #tpu.dot_dimension_numbers<[1], [0], [0], [1], [0, 0, 1, 1], [], []>} : vector<8x8xbf16>, vector<8x8xbf16>, vector<8x8xf32> -> vector<8x8xf32>
    %82 = arith.truncf %81 : vector<8x8xf32> to vector<8x8xbf16>
    %c1_39 = arith.constant 1 : index
    %c0_40 = arith.constant 0 : index
    %c0_41 = arith.constant 0 : index
    %83 = vector.load %arg9[%c1_39, %c0_40, %c0_41] : memref<4x8x32xbf16, #tpu.memory_space<vmem>>, vector<1x8x32xbf16>
    %84 = vector.shape_cast %83 : vector<1x8x32xbf16> to vector<8x32xbf16>
    %cst_42 = arith.constant dense<0.000000e+00> : vector<8x32xf32>
    %85 = tpu.matmul %82, %84, %cst_42 {dimension_numbers = #tpu.dot_dimension_numbers<[1], [0], [0], [1], [0, 0, 1, 1], [], []>} : vector<8x8xbf16>, vector<8x32xbf16>, vector<8x32xf32> -> vector<8x32xf32>
    %86 = arith.addf %62, %85 : vector<8x32xf32>
    %87 = vector.extract_strided_slice %37 {offsets = [0, 16], sizes = [8, 8], strides = [1, 1]} : vector<8x32xf32> to vector<8x8xf32>
    %88 = arith.truncf %87 : vector<8x8xf32> to vector<8x8xbf16>
    %c2 = arith.constant 2 : index
    %c0_43 = arith.constant 0 : index
    %c0_44 = arith.constant 0 : index
    %89 = vector.load %arg18[%c2, %c0_43, %c0_44] : memref<4x8x8xbf16, #tpu.memory_space<vmem>>, vector<1x8x8xbf16>
    %90 = vector.shape_cast %89 : vector<1x8x8xbf16> to vector<8x8xbf16>
    %cst_45 = arith.constant dense<0.000000e+00> : vector<8x8xf32>
    %91 = tpu.matmul %88, %90, %cst_45 {dimension_numbers = #tpu.dot_dimension_numbers<[1], [1], [0], [0], [0, 0, 1, 0], [], []>} : vector<8x8xbf16>, vector<8x8xbf16>, vector<8x8xf32> -> vector<8x8xf32>
    %cst_46 = arith.constant dense<0xFF800000> : vector<8xf32>
    %92 = vector.multi_reduction <maximumf>, %91, %cst_46 [1] : vector<8x8xf32> to vector<8xf32>
    %93 = vector.shape_cast %92 : vector<8xf32> to vector<8x1xf32>
    %94 = vector.broadcast %93 : vector<8x1xf32> to vector<8x8xf32>
    %95 = arith.subf %91, %94 : vector<8x8xf32>
    %96 = math.exp %95 : vector<8x8xf32>
    %cst_47 = arith.constant dense<0.000000e+00> : vector<8xf32>
    %97 = vector.multi_reduction <add>, %96, %cst_47 [1] : vector<8x8xf32> to vector<8xf32>
    %98 = vector.shape_cast %97 : vector<8xf32> to vector<8x1xf32>
    %99 = tpu.reciprocal %98 {approx = true} : vector<8x1xf32> -> vector<8x1xf32>
    %100 = vector.broadcast %99 : vector<8x1xf32> to vector<8x8xf32>
    %101 = arith.mulf %96, %100 : vector<8x8xf32>
    %102 = arith.truncf %101 : vector<8x8xf32> to vector<8x8xbf16>
    %c2_48 = arith.constant 2 : index
    %c0_49 = arith.constant 0 : index
    %c0_50 = arith.constant 0 : index
    %103 = vector.load %arg19[%c2_48, %c0_49, %c0_50] : memref<4x8x8xbf16, #tpu.memory_space<vmem>>, vector<1x8x8xbf16>
    %104 = vector.shape_cast %103 : vector<1x8x8xbf16> to vector<8x8xbf16>
    %cst_51 = arith.constant dense<0.000000e+00> : vector<8x8xf32>
    %105 = tpu.matmul %102, %104, %cst_51 {dimension_numbers = #tpu.dot_dimension_numbers<[1], [0], [0], [1], [0, 0, 1, 1], [], []>} : vector<8x8xbf16>, vector<8x8xbf16>, vector<8x8xf32> -> vector<8x8xf32>
    %106 = arith.truncf %105 : vector<8x8xf32> to vector<8x8xbf16>
    %c2_52 = arith.constant 2 : index
    %c0_53 = arith.constant 0 : index
    %c0_54 = arith.constant 0 : index
    %107 = vector.load %arg9[%c2_52, %c0_53, %c0_54] : memref<4x8x32xbf16, #tpu.memory_space<vmem>>, vector<1x8x32xbf16>
    %108 = vector.shape_cast %107 : vector<1x8x32xbf16> to vector<8x32xbf16>
    %cst_55 = arith.constant dense<0.000000e+00> : vector<8x32xf32>
    %109 = tpu.matmul %106, %108, %cst_55 {dimension_numbers = #tpu.dot_dimension_numbers<[1], [0], [0], [1], [0, 0, 1, 1], [], []>} : vector<8x8xbf16>, vector<8x32xbf16>, vector<8x32xf32> -> vector<8x32xf32>
    %110 = arith.addf %86, %109 : vector<8x32xf32>
    %111 = vector.extract_strided_slice %37 {offsets = [0, 24], sizes = [8, 8], strides = [1, 1]} : vector<8x32xf32> to vector<8x8xf32>
    %112 = arith.truncf %111 : vector<8x8xf32> to vector<8x8xbf16>
    %c3 = arith.constant 3 : index
    %c0_56 = arith.constant 0 : index
    %c0_57 = arith.constant 0 : index
    %113 = vector.load %arg18[%c3, %c0_56, %c0_57] : memref<4x8x8xbf16, #tpu.memory_space<vmem>>, vector<1x8x8xbf16>
    %114 = vector.shape_cast %113 : vector<1x8x8xbf16> to vector<8x8xbf16>
    %cst_58 = arith.constant dense<0.000000e+00> : vector<8x8xf32>
    %115 = tpu.matmul %112, %114, %cst_58 {dimension_numbers = #tpu.dot_dimension_numbers<[1], [1], [0], [0], [0, 0, 1, 0], [], []>} : vector<8x8xbf16>, vector<8x8xbf16>, vector<8x8xf32> -> vector<8x8xf32>
    %cst_59 = arith.constant dense<0xFF800000> : vector<8xf32>
    %116 = vector.multi_reduction <maximumf>, %115, %cst_59 [1] : vector<8x8xf32> to vector<8xf32>
    %117 = vector.shape_cast %116 : vector<8xf32> to vector<8x1xf32>
    %118 = vector.broadcast %117 : vector<8x1xf32> to vector<8x8xf32>
    %119 = arith.subf %115, %118 : vector<8x8xf32>
    %120 = math.exp %119 : vector<8x8xf32>
    %cst_60 = arith.constant dense<0.000000e+00> : vector<8xf32>
    %121 = vector.multi_reduction <add>, %120, %cst_60 [1] : vector<8x8xf32> to vector<8xf32>
    %122 = vector.shape_cast %121 : vector<8xf32> to vector<8x1xf32>
    %123 = tpu.reciprocal %122 {approx = true} : vector<8x1xf32> -> vector<8x1xf32>
    %124 = vector.broadcast %123 : vector<8x1xf32> to vector<8x8xf32>
    %125 = arith.mulf %120, %124 : vector<8x8xf32>
    %126 = arith.truncf %125 : vector<8x8xf32> to vector<8x8xbf16>
    %c3_61 = arith.constant 3 : index
    %c0_62 = arith.constant 0 : index
    %c0_63 = arith.constant 0 : index
    %127 = vector.load %arg19[%c3_61, %c0_62, %c0_63] : memref<4x8x8xbf16, #tpu.memory_space<vmem>>, vector<1x8x8xbf16>
    %128 = vector.shape_cast %127 : vector<1x8x8xbf16> to vector<8x8xbf16>
    %cst_64 = arith.constant dense<0.000000e+00> : vector<8x8xf32>
    %129 = tpu.matmul %126, %128, %cst_64 {dimension_numbers = #tpu.dot_dimension_numbers<[1], [0], [0], [1], [0, 0, 1, 1], [], []>} : vector<8x8xbf16>, vector<8x8xbf16>, vector<8x8xf32> -> vector<8x8xf32>
    %130 = arith.truncf %129 : vector<8x8xf32> to vector<8x8xbf16>
    %c3_65 = arith.constant 3 : index
    %c0_66 = arith.constant 0 : index
    %c0_67 = arith.constant 0 : index
    %131 = vector.load %arg9[%c3_65, %c0_66, %c0_67] : memref<4x8x32xbf16, #tpu.memory_space<vmem>>, vector<1x8x32xbf16>
    %132 = vector.shape_cast %131 : vector<1x8x32xbf16> to vector<8x32xbf16>
    %cst_68 = arith.constant dense<0.000000e+00> : vector<8x32xf32>
    %133 = tpu.matmul %130, %132, %cst_68 {dimension_numbers = #tpu.dot_dimension_numbers<[1], [0], [0], [1], [0, 0, 1, 1], [], []>} : vector<8x8xbf16>, vector<8x32xbf16>, vector<8x32xf32> -> vector<8x32xf32>
    %134 = arith.addf %110, %133 : vector<8x32xf32>
    %135 = arith.addf %7, %134 : vector<8x32xf32>
    %c0_69 = arith.constant 0 : index
    %c0_70 = arith.constant 0 : index
    %136 = vector.load %arg10[%c0_69, %c0_70] : memref<1x32xf32, #tpu.memory_space<vmem>>, vector<1x32xf32>
    %137 = vector.broadcast %136 : vector<1x32xf32> to vector<8x32xf32>
    %138 = arith.addf %135, %137 : vector<8x32xf32>
    %c0_71 = arith.constant 0 : index
    %c0_72 = arith.constant 0 : index
    %139 = vector.load %arg11[%c0_71, %c0_72] : memref<1x32xf32, #tpu.memory_space<vmem>>, vector<1x32xf32>
    %c0_73 = arith.constant 0 : index
    %c0_74 = arith.constant 0 : index
    %140 = vector.load %arg12[%c0_73, %c0_74] : memref<1x32xf32, #tpu.memory_space<vmem>>, vector<1x32xf32>
    %cst_75 = arith.constant dense<0.000000e+00> : vector<8xf32>
    %141 = vector.multi_reduction <add>, %138, %cst_75 [1] : vector<8x32xf32> to vector<8xf32>
    %142 = vector.shape_cast %141 : vector<8xf32> to vector<8x1xf32>
    %cst_76 = arith.constant 3.200000e+01 : f32
    %143 = vector.broadcast %cst_76 : f32 to vector<8x1xf32>
    %144 = arith.divf %142, %143 : vector<8x1xf32>
    %145 = vector.broadcast %144 : vector<8x1xf32> to vector<8x32xf32>
    %146 = arith.subf %138, %145 : vector<8x32xf32>
    %147 = arith.mulf %146, %146 : vector<8x32xf32>
    %cst_77 = arith.constant dense<0.000000e+00> : vector<8xf32>
    %148 = vector.multi_reduction <add>, %147, %cst_77 [1] : vector<8x32xf32> to vector<8xf32>
    %149 = vector.shape_cast %148 : vector<8xf32> to vector<8x1xf32>
    %cst_78 = arith.constant 3.200000e+01 : f32
    %150 = vector.broadcast %cst_78 : f32 to vector<8x1xf32>
    %151 = arith.divf %149, %150 : vector<8x1xf32>
    %152 = vector.broadcast %144 : vector<8x1xf32> to vector<8x32xf32>
    %153 = arith.subf %138, %152 : vector<8x32xf32>
    %cst_79 = arith.constant 9.99999974E-6 : f32
    %154 = vector.broadcast %cst_79 : f32 to vector<8x1xf32>
    %155 = arith.addf %151, %154 : vector<8x1xf32>
    %156 = math.rsqrt %155 : vector<8x1xf32>
    %157 = vector.broadcast %156 : vector<8x1xf32> to vector<8x32xf32>
    %158 = arith.mulf %153, %157 : vector<8x32xf32>
    %159 = vector.broadcast %139 : vector<1x32xf32> to vector<8x32xf32>
    %160 = arith.mulf %158, %159 : vector<8x32xf32>
    %161 = vector.broadcast %140 : vector<1x32xf32> to vector<8x32xf32>
    %162 = arith.addf %160, %161 : vector<8x32xf32>
    %163 = arith.truncf %162 : vector<8x32xf32> to vector<8x32xbf16>
    %c0_80 = arith.constant 0 : index
    %c0_81 = arith.constant 0 : index
    %164 = vector.load %arg13[%c0_80, %c0_81] : memref<32x128xbf16, #tpu.memory_space<vmem>>, vector<32x128xbf16>
    %cst_82 = arith.constant dense<0.000000e+00> : vector<8x128xf32>
    %165 = tpu.matmul %163, %164, %cst_82 {dimension_numbers = #tpu.dot_dimension_numbers<[1], [0], [0], [1], [0, 0, 1, 1], [], []>} : vector<8x32xbf16>, vector<32x128xbf16>, vector<8x128xf32> -> vector<8x128xf32>
    %c0_83 = arith.constant 0 : index
    %c0_84 = arith.constant 0 : index
    %166 = vector.load %arg14[%c0_83, %c0_84] : memref<1x128xf32, #tpu.memory_space<vmem>>, vector<1x128xf32>
    %167 = vector.broadcast %166 : vector<1x128xf32> to vector<8x128xf32>
    %168 = arith.addf %165, %167 : vector<8x128xf32>
    %cst_85 = arith.constant 5.000000e-01 : f32
    %169 = vector.broadcast %cst_85 : f32 to vector<8x128xf32>
    %170 = arith.mulf %169, %168 : vector<8x128xf32>
    %cst_86 = arith.constant 0.707106769 : f32
    %171 = vector.broadcast %cst_86 : f32 to vector<8x128xf32>
    %172 = arith.mulf %168, %171 : vector<8x128xf32>
    %173 = math.erf %172 : vector<8x128xf32>
    %cst_87 = arith.constant 1.000000e+00 : f32
    %174 = vector.broadcast %cst_87 : f32 to vector<8x128xf32>
    %175 = arith.addf %174, %173 : vector<8x128xf32>
    %176 = arith.mulf %170, %175 : vector<8x128xf32>
    %177 = arith.truncf %176 : vector<8x128xf32> to vector<8x128xbf16>
    %c0_88 = arith.constant 0 : index
    %c0_89 = arith.constant 0 : index
    %178 = vector.load %arg15[%c0_88, %c0_89] : memref<128x32xbf16, #tpu.memory_space<vmem>>, vector<128x32xbf16>
    %cst_90 = arith.constant dense<0.000000e+00> : vector<8x32xf32>
    %179 = tpu.matmul %177, %178, %cst_90 {dimension_numbers = #tpu.dot_dimension_numbers<[1], [0], [0], [1], [0, 0, 1, 1], [], []>} : vector<8x128xbf16>, vector<128x32xbf16>, vector<8x32xf32> -> vector<8x32xf32>
    %c0_91 = arith.constant 0 : index
    %c0_92 = arith.constant 0 : index
    %180 = vector.load %arg16[%c0_91, %c0_92] : memref<1x32xf32, #tpu.memory_space<vmem>>, vector<1x32xf32>
    %181 = vector.broadcast %180 : vector<1x32xf32> to vector<8x32xf32>
    %182 = arith.addf %179, %181 : vector<8x32xf32>
    %183 = arith.addf %138, %182 : vector<8x32xf32>
    %c0_93 = arith.constant 0 : index
    %c0_94 = arith.constant 0 : index
    %c0_95 = arith.constant 0 : index
    %184 = vector.load %arg17[%c0_93, %c0_94, %c0_95] : memref<1x8x32xf32, #tpu.memory_space<vmem>>, vector<1x8x32xf32>
    %185 = vector.shape_cast %184 : vector<1x8x32xf32> to vector<8x32xf32>
    %186 = vector.shape_cast %183 : vector<8x32xf32> to vector<1x8x32xf32>
    tpu.vector_store %arg17[%c0_93, %c0_94, %c0_95], %186 {strides = array<i32>} : memref<1x8x32xf32, #tpu.memory_space<vmem>>, vector<1x8x32xf32>,
    return
  }
  func.func @transform_0(%arg0: i32, %arg1: i32) -> (i32, i32, i32) {
    %c0_i32 = arith.constant 0 : i32
    %c0_i32_0 = arith.constant 0 : i32
    %c0_i32_1 = arith.constant 0 : i32
    return %arg0, %c0_i32, %c0_i32_0 : i32, i32, i32
  }
  func.func @transform_1(%arg0: i32, %arg1: i32) -> (i32, i32) {
    %c0_i32 = arith.constant 0 : i32
    %c0_i32_0 = arith.constant 0 : i32
    %c0_i32_1 = arith.constant 0 : i32
    return %c0_i32, %c0_i32_0 : i32, i32
  }
  func.func @transform_2(%arg0: i32, %arg1: i32) -> (i32, i32) {
    %c0_i32 = arith.constant 0 : i32
    %c0_i32_0 = arith.constant 0 : i32
    %c0_i32_1 = arith.constant 0 : i32
    return %c0_i32, %c0_i32_0 : i32, i32
  }
  func.func @transform_3(%arg0: i32, %arg1: i32) -> (i32, i32) {
    %c0_i32 = arith.constant 0 : i32
    %c0_i32_0 = arith.constant 0 : i32
    %c0_i32_1 = arith.constant 0 : i32
    return %c0_i32, %c0_i32_0 : i32, i32
  }
  func.func @transform_4(%arg0: i32, %arg1: i32) -> (i32, i32) {
    %c0_i32 = arith.constant 0 : i32
    %c0_i32_0 = arith.constant 0 : i32
    %c0_i32_1 = arith.constant 0 : i32
    return %c0_i32, %c0_i32_0 : i32, i32
  }
  func.func @transform_5(%arg0: i32, %arg1: i32) -> (i32, i32) {
    %c0_i32 = arith.constant 0 : i32
    %c0_i32_0 = arith.constant 0 : i32
    %c0_i32_1 = arith.constant 0 : i32
    return %c0_i32, %c0_i32_0 : i32, i32
  }
  func.func @transform_6(%arg0: i32, %arg1: i32) -> (i32, i32) {
    %c0_i32 = arith.constant 0 : i32
    %c0_i32_0 = arith.constant 0 : i32
    %c0_i32_1 = arith.constant 0 : i32
    return %c0_i32, %c0_i32_0 : i32, i32
  }
  func.func @transform_7(%arg0: i32, %arg1: i32) -> (i32, i32, i32) {
    %c0_i32 = arith.constant 0 : i32
    %c0_i32_0 = arith.constant 0 : i32
    %c0_i32_1 = arith.constant 0 : i32
    %c0_i32_2 = arith.constant 0 : i32
    return %c0_i32, %c0_i32_0, %c0_i32_1 : i32, i32, i32
  }
  func.func @transform_8(%arg0: i32, %arg1: i32) -> (i32, i32) {
    %c0_i32 = arith.constant 0 : i32
    %c0_i32_0 = arith.constant 0 : i32
    %c0_i32_1 = arith.constant 0 : i32
    return %c0_i32, %c0_i32_0 : i32, i32
  }
  func.func @transform_9(%arg0: i32, %arg1: i32) -> (i32, i32) {
    %c0_i32 = arith.constant 0 : i32
    %c0_i32_0 = arith.constant 0 : i32
    %c0_i32_1 = arith.constant 0 : i32
    return %c0_i32, %c0_i32_0 : i32, i32
  }
  func.func @transform_10(%arg0: i32, %arg1: i32) -> (i32, i32) {
    %c0_i32 = arith.constant 0 : i32
    %c0_i32_0 = arith.constant 0 : i32
    %c0_i32_1 = arith.constant 0 : i32
    return %c0_i32, %c0_i32_0 : i32, i32
  }
  func.func @transform_11(%arg0: i32, %arg1: i32) -> (i32, i32) {
    %c0_i32 = arith.constant 0 : i32
    %c0_i32_0 = arith.constant 0 : i32
    %c0_i32_1 = arith.constant 0 : i32
    return %c0_i32, %c0_i32_0 : i32, i32
  }
  func.func @transform_12(%arg0: i32, %arg1: i32) -> (i32, i32) {
    %c0_i32 = arith.constant 0 : i32
    %c0_i32_0 = arith.constant 0 : i32
    %c0_i32_1 = arith.constant 0 : i32
    return %c0_i32, %c0_i32_0 : i32, i32
  }
  func.func @transform_13(%arg0: i32, %arg1: i32) -> (i32, i32) {
    %c0_i32 = arith.constant 0 : i32
    %c0_i32_0 = arith.constant 0 : i32
    %c0_i32_1 = arith.constant 0 : i32
    return %c0_i32, %c0_i32_0 : i32, i32
  }
  func.func @transform_14(%arg0: i32, %arg1: i32) -> (i32, i32) {
    %c0_i32 = arith.constant 0 : i32
    %c0_i32_0 = arith.constant 0 : i32
    %c0_i32_1 = arith.constant 0 : i32
    return %c0_i32, %c0_i32_0 : i32, i32
  }
  func.func @transform_15(%arg0: i32, %arg1: i32) -> (i32, i32, i32) {
    %c0_i32 = arith.constant 0 : i32
    %c0_i32_0 = arith.constant 0 : i32
    return %arg0, %arg1, %c0_i32 : i32, i32, i32
  }
}

</mosaic_0001>

<llo_original>
// kernel: tpu_custom_call.1
$region0: #{tpu_custom_call.1}
  #allocation0 [shape = 'u32[]', space=smem, size = 0x4, offset = 0x4, fixed_abs, tag = 'smem constant byte address 0x4 - core index']
  #allocation1 [shape = 'u32[144,128]{1,0:T(1,128)}', space=vmem, size = 0x12000, scoped, tag = 'internal scratch']
  #allocation2 [shape = 'bf16[4,8,8]{2,1,0:T(8,128)(2,1)}', space=vmem, size = 0x2000, scoped, tag = 'scratch operand']
  #allocation3 [shape = 'bf16[4,8,8]{2,1,0:T(8,128)(2,1)}', space=vmem, size = 0x2000, scoped, tag = 'scratch operand']
  %s0 = inlined_call_operand.vmem [shape: f32[2,8,32], index: 0, kind: input, shape index: {}]
  %s1 = inlined_call_operand.vmem [shape: f32[1,32], index: 1, kind: input, shape index: {}]
  %s2 = inlined_call_operand.vmem [shape: f32[1,32], index: 2, kind: input, shape index: {}]
  %s3 = inlined_call_operand.vmem [shape: bf16[32,32], index: 3, kind: input, shape index: {}]
  %s4 = inlined_call_operand.vmem [shape: f32[1,32], index: 4, kind: input, shape index: {}]
  %s5 = inlined_call_operand.vmem [shape: bf16[32,64], index: 5, kind: input, shape index: {}]
  %s6 = inlined_call_operand.vmem [shape: f32[1,64], index: 6, kind: input, shape index: {}]
  %s7 = inlined_call_operand.vmem [shape: bf16[4,8,32], index: 7, kind: input, shape index: {}]
  %s8 = inlined_call_operand.vmem [shape: f32[1,32], index: 8, kind: input, shape index: {}]
  %s9 = inlined_call_operand.vmem [shape: f32[1,32], index: 9, kind: input, shape index: {}]
  %s10 = inlined_call_operand.vmem [shape: f32[1,32], index: 10, kind: input, shape index: {}]
  %s11 = inlined_call_operand.vmem [shape: bf16[32,128], index: 11, kind: input, shape index: {}]
  %s12 = inlined_call_operand.vmem [shape: f32[1,128], index: 12, kind: input, shape index: {}]
  %s13 = inlined_call_operand.vmem [shape: bf16[128,32], index: 13, kind: input, shape index: {}]
  %s14 = inlined_call_operand.vmem [shape: f32[1,32], index: 14, kind: input, shape index: {}]
  %s15 = inlined_call_operand.hbm [shape: f32[2,8,32], index: 15, kind: output, shape index: {}]
  %s16 = sld [smem:[#allocation0]]
  $region97: #{tpu_custom_call.1} parent=0
    _
  %s18 = ssub.s32 1, %s16
  %s19 = scalar_select 0, %s18, %s16
  $region1: #{tpu_custom_call.1} parent=0
    #allocation4 [shape = 'u8[8192]{0}', space=vmem, size = 0x2000, scoped, tag = 'output window, operand 0']
    #allocation5 [shape = 's32[2]{0}', space=sflag, size = 0x8, scoped, tag = 'scoped memory for tpu_custom_call.1']
    %20 = vsyncpa [#allocation5], 0
    %s21 = scalar_lea.sflag [#allocation5], 1
    %22 = vsyncpa %s21, 0
    loop: start=0, step=1, limit=4
    $region2: #{tpu_custom_call.1} parent=1 // loop_pre_header
      _
    $region3: #{tpu_custom_call.1} parent=1 // loop_header
      %s24 = sphi 0, %s28
      %p25 = scmp.ge.s32.totalorder %s24, 4
      %s31 = sphi 0, %s43
      %s32 = sphi 0, %s39
      %s33 = sphi 0, %s31
      %s34 = sphi 0, %s32
      %s35 = sphi 0, %s33
      %s36 = sphi 0, %s34
      %s46 = sphi 0, %s48
      %s49 = sphi 0, %s46
      %s50 = sphi 0, %s49
      %s66 = sphi 0, %s50
      %s70 = sphi 0, %s70
      %s72 = sphi 0, %s70
      %s73 = sphi 0, %s72
      %s87 = sphi 0, %s73
      %s91 = sphi 0, %s91
      %s93 = sphi 0, %s91
      %s94 = sphi 0, %s93
      %s108 = sphi 0, %s94
      %s112 = sphi 0, %s112
      %s114 = sphi 0, %s112
      %s115 = sphi 0, %s114
      %s129 = sphi 0, %s115
      %s133 = sphi 0, %s133
      %s135 = sphi 0, %s133
      %s136 = sphi 0, %s135
      %s150 = sphi 0, %s136
      %s154 = sphi 0, %s154
      %s156 = sphi 0, %s154
      %s157 = sphi 0, %s156
      %s171 = sphi 0, %s157
      %s175 = sphi 0, %s175
      %s177 = sphi 0, %s175
      %s178 = sphi 0, %s177
      %s192 = sphi 0, %s178
      %s196 = sphi 0, %s196
      %s198 = sphi 0, %s196
      %s199 = sphi 0, %s198
      %s213 = sphi 0, %s199
      %s217 = sphi 0, %s217
      %s219 = sphi 0, %s217
      %s220 = sphi 0, %s219
      %s234 = sphi 0, %s220
      %s238 = sphi 0, %s238
      %s240 = sphi 0, %s238
      %s241 = sphi 0, %s240
      %s255 = sphi 0, %s241
      %s259 = sphi 0, %s259
      %s261 = sphi 0, %s259
      %s262 = sphi 0, %s261
      %s276 = sphi 0, %s262
      %s280 = sphi 0, %s280
      %s282 = sphi 0, %s280
      %s283 = sphi 0, %s282
      %s297 = sphi 0, %s283
      %s301 = sphi 0, %s301
      %s303 = sphi 0, %s301
      %s304 = sphi 0, %s303
      %s318 = sphi 0, %s304
      %s322 = sphi 0, %s322
      %s324 = sphi 0, %s322
      %s325 = sphi 0, %s324
      %s339 = sphi 0, %s325
      %s343 = sphi 0, %s343
      %s345 = sphi 0, %s343
      %s346 = sphi 0, %s345
      %s360 = sphi 0, %s346
      %s368 = sphi 0, %s370
      %s371 = sphi 0, %s368
      %s372 = sphi 0, %s371
      %s388 = sphi 0, %s372
    $region4: #{tpu_custom_call.1} parent=1 // loop_header_branch
      %27 = sbr.rel (%p25) target = $region8
    $region5: #{tpu_custom_call.1} parent=1 // loop_body
      %s29 = ssub.s32 %s24, 1
      %s30 = ssub.s32 %s24, 2
      %s37 = sadd.s32 1, %s32
      %p38 = scmp.ge.s32.totalorder %s37, 1
      %s39 = scalar_select %p38, 0, %s37
      %s40 = sadd.s32 1, %s31
      %s41 = scalar_select %p38, %s40, %s31
      %p42 = scmp.ge.s32.totalorder %s41, 2
      %s43 = scalar_select %p42, 0, %s41
      %s44 = ssub.s32 %s31, %s43
      %p45 = scmp.eq.s32.totalorder %s44, 0
      %s47 = sadd.s32 %s46, 1
      %s48 = scalar_select %p45, %s46, %s47
      %p51 = pneg %p45
      %p52 = scmp.eq.s32.totalorder %s24, 1
      %p53 = por %p51, %p52
      %p54 = scmp.ne.s32.totalorder %s46, %s49
      %p55 = scmp.eq.s32.totalorder %s24, 0
      %p56 = por %p54, %p55
      %p57 = scmp.ne.s32.totalorder %s46, %s49
      %p58 = scmp.eq.s32.totalorder %s29, 1
      %p59 = por %p57, %p58
      %p60 = scmp.ne.s32.totalorder %s49, %s50
      %p61 = scmp.eq.s32.totalorder %s29, 0
      %p62 = por %p60, %p61
      %p63 = scmp.ne.s32.totalorder %s49, %s50
      %p64 = scmp.eq.s32.totalorder %s30, 1
      %p65 = por %p63, %p64
      %p67 = scmp.ne.s32.totalorder %s50, %s66
      %p68 = scmp.eq.s32.totalorder %s30, 0
      %p69 = por %p67, %p68
      %s71 = sadd.s32 %s70, 1
      %p74 = scmp.eq.s32.totalorder %s24, 1
      %p75 = scmp.ne.s32.totalorder %s70, %s72
      %p76 = scmp.eq.s32.totalorder %s24, 0
      %p77 = por %p75, %p76
      %p78 = scmp.ne.s32.totalorder %s70, %s72
      %p79 = scmp.eq.s32.totalorder %s29, 1
      %p80 = por %p78, %p79
      %p81 = scmp.ne.s32.totalorder %s72, %s73
      %p82 = scmp.eq.s32.totalorder %s29, 0
      %p83 = por %p81, %p82
      %p84 = scmp.ne.s32.totalorder %s72, %s73
      %p85 = scmp.eq.s32.totalorder %s30, 1
      %p86 = por %p84, %p85
      %p88 = scmp.ne.s32.totalorder %s73, %s87
      %p89 = scmp.eq.s32.totalorder %s30, 0
      %p90 = por %p88, %p89
      %s92 = sadd.s32 %s91, 1
      %p95 = scmp.eq.s32.totalorder %s24, 1
      %p96 = scmp.ne.s32.totalorder %s91, %s93
      %p97 = scmp.eq.s32.totalorder %s24, 0
      %p98 = por %p96, %p97
      %p99 = scmp.ne.s32.totalorder %s91, %s93
      %p100 = scmp.eq.s32.totalorder %s29, 1
      %p101 = por %p99, %p100
      %p102 = scmp.ne.s32.totalorder %s93, %s94
      %p103 = scmp.eq.s32.totalorder %s29, 0
      %p104 = por %p102, %p103
      %p105 = scmp.ne.s32.totalorder %s93, %s94
      %p106 = scmp.eq.s32.totalorder %s30, 1
      %p107 = por %p105, %p106
      %p109 = scmp.ne.s32.totalorder %s94, %s108
      %p110 = scmp.eq.s32.totalorder %s30, 0
      %p111 = por %p109, %p110
      %s113 = sadd.s32 %s112, 1
      %p116 = scmp.eq.s32.totalorder %s24, 1
      %p117 = scmp.ne.s32.totalorder %s112, %s114
      %p118 = scmp.eq.s32.totalorder %s24, 0
      %p119 = por %p117, %p118
      %p120 = scmp.ne.s32.totalorder %s112, %s114
      %p121 = scmp.eq.s32.totalorder %s29, 1
      %p122 = por %p120, %p121
      %p123 = scmp.ne.s32.totalorder %s114, %s115
      %p124 = scmp.eq.s32.totalorder %s29, 0
      %p125 = por %p123, %p124
      %p126 = scmp.ne.s32.totalorder %s114, %s115
      %p127 = scmp.eq.s32.totalorder %s30, 1
      %p128 = por %p126, %p127
      %p130 = scmp.ne.s32.totalorder %s115, %s129
      %p131 = scmp.eq.s32.totalorder %s30, 0
      %p132 = por %p130, %p131
      %s134 = sadd.s32 %s133, 1
      %p137 = scmp.eq.s32.totalorder %s24, 1
      %p138 = scmp.ne.s32.totalorder %s133, %s135
      %p139 = scmp.eq.s32.totalorder %s24, 0
      %p140 = por %p138, %p139
      %p141 = scmp.ne.s32.totalorder %s133, %s135
      %p142 = scmp.eq.s32.totalorder %s29, 1
      %p143 = por %p141, %p142
      %p144 = scmp.ne.s32.totalorder %s135, %s136
      %p145 = scmp.eq.s32.totalorder %s29, 0
      %p146 = por %p144, %p145
      %p147 = scmp.ne.s32.totalorder %s135, %s136
      %p148 = scmp.eq.s32.totalorder %s30, 1
      %p149 = por %p147, %p148
      %p151 = scmp.ne.s32.totalorder %s136, %s150
      %p152 = scmp.eq.s32.totalorder %s30, 0
      %p153 = por %p151, %p152
      %s155 = sadd.s32 %s154, 1
      %p158 = scmp.eq.s32.totalorder %s24, 1
      %p159 = scmp.ne.s32.totalorder %s154, %s156
      %p160 = scmp.eq.s32.totalorder %s24, 0
      %p161 = por %p159, %p160
      %p162 = scmp.ne.s32.totalorder %s154, %s156
      %p163 = scmp.eq.s32.totalorder %s29, 1
      %p164 = por %p162, %p163
      %p165 = scmp.ne.s32.totalorder %s156, %s157
      %p166 = scmp.eq.s32.totalorder %s29, 0
      %p167 = por %p165, %p166
      %p168 = scmp.ne.s32.totalorder %s156, %s157
      %p169 = scmp.eq.s32.totalorder %s30, 1
      %p170 = por %p168, %p169
      %p172 = scmp.ne.s32.totalorder %s157, %s171
      %p173 = scmp.eq.s32.totalorder %s30, 0
      %p174 = por %p172, %p173
      %s176 = sadd.s32 %s175, 1
      %p179 = scmp.eq.s32.totalorder %s24, 1
      %p180 = scmp.ne.s32.totalorder %s175, %s177
      %p181 = scmp.eq.s32.totalorder %s24, 0
      %p182 = por %p180, %p181
      %p183 = scmp.ne.s32.totalorder %s175, %s177
      %p184 = scmp.eq.s32.totalorder %s29, 1
      %p185 = por %p183, %p184
      %p186 = scmp.ne.s32.totalorder %s177, %s178
      %p187 = scmp.eq.s32.totalorder %s29, 0
      %p188 = por %p186, %p187
      %p189 = scmp.ne.s32.totalorder %s177, %s178
      %p190 = scmp.eq.s32.totalorder %s30, 1
      %p191 = por %p189, %p190
      %p193 = scmp.ne.s32.totalorder %s178, %s192
      %p194 = scmp.eq.s32.totalorder %s30, 0
      %p195 = por %p193, %p194
      %s197 = sadd.s32 %s196, 1
      %p200 = scmp.eq.s32.totalorder %s24, 1
      %p201 = scmp.ne.s32.totalorder %s196, %s198
      %p202 = scmp.eq.s32.totalorder %s24, 0
      %p203 = por %p201, %p202
      %p204 = scmp.ne.s32.totalorder %s196, %s198
      %p205 = scmp.eq.s32.totalorder %s29, 1
      %p206 = por %p204, %p205
      %p207 = scmp.ne.s32.totalorder %s198, %s199
      %p208 = scmp.eq.s32.totalorder %s29, 0
      %p209 = por %p207, %p208
      %p210 = scmp.ne.s32.totalorder %s198, %s199
      %p211 = scmp.eq.s32.totalorder %s30, 1
      %p212 = por %p210, %p211
      %p214 = scmp.ne.s32.totalorder %s199, %s213
      %p215 = scmp.eq.s32.totalorder %s30, 0
      %p216 = por %p214, %p215
      %s218 = sadd.s32 %s217, 1
      %p221 = scmp.eq.s32.totalorder %s24, 1
      %p222 = scmp.ne.s32.totalorder %s217, %s219
      %p223 = scmp.eq.s32.totalorder %s24, 0
      %p224 = por %p222, %p223
      %p225 = scmp.ne.s32.totalorder %s217, %s219
      %p226 = scmp.eq.s32.totalorder %s29, 1
      %p227 = por %p225, %p226
      %p228 = scmp.ne.s32.totalorder %s219, %s220
      %p229 = scmp.eq.s32.totalorder %s29, 0
      %p230 = por %p228, %p229
      %p231 = scmp.ne.s32.totalorder %s219, %s220
      %p232 = scmp.eq.s32.totalorder %s30, 1
      %p233 = por %p231, %p232
      %p235 = scmp.ne.s32.totalorder %s220, %s234
      %p236 = scmp.eq.s32.totalorder %s30, 0
      %p237 = por %p235, %p236
      %s239 = sadd.s32 %s238, 1
      %p242 = scmp.eq.s32.totalorder %s24, 1
      %p243 = scmp.ne.s32.totalorder %s238, %s240
      %p244 = scmp.eq.s32.totalorder %s24, 0
      %p245 = por %p243, %p244
      %p246 = scmp.ne.s32.totalorder %s238, %s240
      %p247 = scmp.eq.s32.totalorder %s29, 1
      %p248 = por %p246, %p247
      %p249 = scmp.ne.s32.totalorder %s240, %s241
      %p250 = scmp.eq.s32.totalorder %s29, 0
      %p251 = por %p249, %p250
      %p252 = scmp.ne.s32.totalorder %s240, %s241
      %p253 = scmp.eq.s32.totalorder %s30, 1
      %p254 = por %p252, %p253
      %p256 = scmp.ne.s32.totalorder %s241, %s255
      %p257 = scmp.eq.s32.totalorder %s30, 0
      %p258 = por %p256, %p257
      %s260 = sadd.s32 %s259, 1
      %p263 = scmp.eq.s32.totalorder %s24, 1
      %p264 = scmp.ne.s32.totalorder %s259, %s261
      %p265 = scmp.eq.s32.totalorder %s24, 0
      %p266 = por %p264, %p265
      %p267 = scmp.ne.s32.totalorder %s259, %s261
      %p268 = scmp.eq.s32.totalorder %s29, 1
      %p269 = por %p267, %p268
      %p270 = scmp.ne.s32.totalorder %s261, %s262
      %p271 = scmp.eq.s32.totalorder %s29, 0
      %p272 = por %p270, %p271
      %p273 = scmp.ne.s32.totalorder %s261, %s262
      %p274 = scmp.eq.s32.totalorder %s30, 1
      %p275 = por %p273, %p274
      %p277 = scmp.ne.s32.totalorder %s262, %s276
      %p278 = scmp.eq.s32.totalorder %s30, 0
      %p279 = por %p277, %p278
      %s281 = sadd.s32 %s280, 1
      %p284 = scmp.eq.s32.totalorder %s24, 1
      %p285 = scmp.ne.s32.totalorder %s280, %s282
      %p286 = scmp.eq.s32.totalorder %s24, 0
      %p287 = por %p285, %p286
      %p288 = scmp.ne.s32.totalorder %s280, %s282
      %p289 = scmp.eq.s32.totalorder %s29, 1
      %p290 = por %p288, %p289
      %p291 = scmp.ne.s32.totalorder %s282, %s283
      %p292 = scmp.eq.s32.totalorder %s29, 0
      %p293 = por %p291, %p292
      %p294 = scmp.ne.s32.totalorder %s282, %s283
      %p295 = scmp.eq.s32.totalorder %s30, 1
      %p296 = por %p294, %p295
      %p298 = scmp.ne.s32.totalorder %s283, %s297
      %p299 = scmp.eq.s32.totalorder %s30, 0
      %p300 = por %p298, %p299
      %s302 = sadd.s32 %s301, 1
      %p305 = scmp.eq.s32.totalorder %s24, 1
      %p306 = scmp.ne.s32.totalorder %s301, %s303
      %p307 = scmp.eq.s32.totalorder %s24, 0
      %p308 = por %p306, %p307
      %p309 = scmp.ne.s32.totalorder %s301, %s303
      %p310 = scmp.eq.s32.totalorder %s29, 1
      %p311 = por %p309, %p310
      %p312 = scmp.ne.s32.totalorder %s303, %s304
      %p313 = scmp.eq.s32.totalorder %s29, 0
      %p314 = por %p312, %p313
      %p315 = scmp.ne.s32.totalorder %s303, %s304
      %p316 = scmp.eq.s32.totalorder %s30, 1
      %p317 = por %p315, %p316
      %p319 = scmp.ne.s32.totalorder %s304, %s318
      %p320 = scmp.eq.s32.totalorder %s30, 0
      %p321 = por %p319, %p320
      %s323 = sadd.s32 %s322, 1
      %p326 = scmp.eq.s32.totalorder %s24, 1
      %p327 = scmp.ne.s32.totalorder %s322, %s324
      %p328 = scmp.eq.s32.totalorder %s24, 0
      %p329 = por %p327, %p328
      %p330 = scmp.ne.s32.totalorder %s322, %s324
      %p331 = scmp.eq.s32.totalorder %s29, 1
      %p332 = por %p330, %p331
      %p333 = scmp.ne.s32.totalorder %s324, %s325
      %p334 = scmp.eq.s32.totalorder %s29, 0
      %p335 = por %p333, %p334
      %p336 = scmp.ne.s32.totalorder %s324, %s325
      %p337 = scmp.eq.s32.totalorder %s30, 1
      %p338 = por %p336, %p337
      %p340 = scmp.ne.s32.totalorder %s325, %s339
      %p341 = scmp.eq.s32.totalorder %s30, 0
      %p342 = por %p340, %p341
      %s344 = sadd.s32 %s343, 1
      %p347 = scmp.eq.s32.totalorder %s24, 1
      %p348 = scmp.ne.s32.totalorder %s343, %s345
      %p349 = scmp.eq.s32.totalorder %s24, 0
      %p350 = por %p348, %p349
      %p351 = scmp.ne.s32.totalorder %s343, %s345
      %p352 = scmp.eq.s32.totalorder %s29, 1
      %p353 = por %p351, %p352
      %p354 = scmp.ne.s32.totalorder %s345, %s346
      %p355 = scmp.eq.s32.totalorder %s29, 0
      %p356 = por %p354, %p355
      %p357 = scmp.ne.s32.totalorder %s345, %s346
      %p358 = scmp.eq.s32.totalorder %s30, 1
      %p359 = por %p357, %p358
      %p361 = scmp.ne.s32.totalorder %s346, %s360
      %p362 = scmp.eq.s32.totalorder %s30, 0
      %p363 = por %p361, %p362
      %s364 = ssub.s32 %s31, %s43
      %s365 = ssub.s32 %s32, %s39
      %s366 = sor.u32 %s364, %s365
      %p367 = scmp.eq.s32.totalorder %s366, 0
      %s369 = sadd.s32 %s368, 1
      %s370 = scalar_select %p367, %s368, %s369
      %p373 = pneg %p367
      %p374 = scmp.eq.s32.totalorder %s24, 1
      %p375 = por %p373, %p374
      %p376 = scmp.ne.s32.totalorder %s368, %s371
      %p377 = scmp.eq.s32.totalorder %s24, 0
      %p378 = por %p376, %p377
      %p379 = scmp.ne.s32.totalorder %s368, %s371
      %p380 = scmp.eq.s32.totalorder %s29, 1
      %p381 = por %p379, %p380
      %p382 = scmp.ne.s32.totalorder %s371, %s372
      %p383 = scmp.eq.s32.totalorder %s29, 0
      %p384 = por %p382, %p383
      %p385 = scmp.ne.s32.totalorder %s371, %s372
      %p386 = scmp.eq.s32.totalorder %s30, 1
      %p387 = por %p385, %p386
      %p389 = scmp.ne.s32.totalorder %s372, %s388
      %p390 = scmp.eq.s32.totalorder %s30, 0
      %p391 = por %p389, %p390
      %p392 = scmp.le.s32.totalorder 1, %s24
      %p393 = scmp.lt.s32.totalorder %s24, 3
      %p394 = pnand %p392, %p393
      %p395 = pneg %p394
      // Predicated region
      $region9: #{tpu_custom_call.1} parent=5 // pred_check
        _
      $region10: #{tpu_custom_call.1} parent=5 // pred_check_branch
        %397 = sbr.rel (%p394) target = $region12
      $region11: #{tpu_custom_call.1} parent=5 // pred_region
        %s398 = ssub.s32 %s24, 1
        // Predicated region
        $region13: #{tpu_custom_call.1} parent=11 // pred_check
          %p399 = pneg %p83
        $region14: #{tpu_custom_call.1} parent=11 // pred_check_branch
          %401 = sbr.rel (%p399) target = $region16
        $region15: #{tpu_custom_call.1} parent=11 // pred_region
          _
        $region16: #{tpu_custom_call.1} parent=11 // pred_fallthru
          _
        // Predicated region
        $region17: #{tpu_custom_call.1} parent=11 // pred_check
          %p402 = pneg %p104
        $region18: #{tpu_custom_call.1} parent=11 // pred_check_branch
          %404 = sbr.rel (%p402) target = $region20
        $region19: #{tpu_custom_call.1} parent=11 // pred_region
          _
        $region20: #{tpu_custom_call.1} parent=11 // pred_fallthru
          _
        // Predicated region
        $region21: #{tpu_custom_call.1} parent=11 // pred_check
          %p405 = pneg %p125
        $region22: #{tpu_custom_call.1} parent=11 // pred_check_branch
          %407 = sbr.rel (%p405) target = $region24
        $region23: #{tpu_custom_call.1} parent=11 // pred_region
          _
        $region24: #{tpu_custom_call.1} parent=11 // pred_fallthru
          _
        // Predicated region
        $region25: #{tpu_custom_call.1} parent=11 // pred_check
          %p408 = pneg %p146
        $region26: #{tpu_custom_call.1} parent=11 // pred_check_branch
          %410 = sbr.rel (%p408) target = $region28
        $region27: #{tpu_custom_call.1} parent=11 // pred_region
          _
        $region28: #{tpu_custom_call.1} parent=11 // pred_fallthru
          _
        // Predicated region
        $region29: #{tpu_custom_call.1} parent=11 // pred_check
          %p411 = pneg %p167
        $region30: #{tpu_custom_call.1} parent=11 // pred_check_branch
          %413 = sbr.rel (%p411) target = $region32
        $region31: #{tpu_custom_call.1} parent=11 // pred_region
          _
        $region32: #{tpu_custom_call.1} parent=11 // pred_fallthru
          _
        // Predicated region
        $region33: #{tpu_custom_call.1} parent=11 // pred_check
          %p414 = pneg %p188
        $region34: #{tpu_custom_call.1} parent=11 // pred_check_branch
          %416 = sbr.rel (%p414) target = $region36
        $region35: #{tpu_custom_call.1} parent=11 // pred_region
          _
        $region36: #{tpu_custom_call.1} parent=11 // pred_fallthru
          _
        // Predicated region
        $region37: #{tpu_custom_call.1} parent=11 // pred_check
          %p417 = pneg %p209
        $region38: #{tpu_custom_call.1} parent=11 // pred_check_branch
          %419 = sbr.rel (%p417) target = $region40
        $region39: #{tpu_custom_call.1} parent=11 // pred_region
          _
        $region40: #{tpu_custom_call.1} parent=11 // pred_fallthru
          _
        // Predicated region
        $region41: #{tpu_custom_call.1} parent=11 // pred_check
          %p420 = pneg %p230
        $region42: #{tpu_custom_call.1} parent=11 // pred_check_branch
          %422 = sbr.rel (%p420) target = $region44
        $region43: #{tpu_custom_call.1} parent=11 // pred_region
          _
        $region44: #{tpu_custom_call.1} parent=11 // pred_fallthru
          _
        // Predicated region
        $region45: #{tpu_custom_call.1} parent=11 // pred_check
          %p423 = pneg %p251
        $region46: #{tpu_custom_call.1} parent=11 // pred_check_branch
          %425 = sbr.rel (%p423) target = $region48
        $region47: #{tpu_custom_call.1} parent=11 // pred_region
          _
        $region48: #{tpu_custom_call.1} parent=11 // pred_fallthru
          _
        // Predicated region
        $region49: #{tpu_custom_call.1} parent=11 // pred_check
          %p426 = pneg %p272
        $region50: #{tpu_custom_call.1} parent=11 // pred_check_branch
          %428 = sbr.rel (%p426) target = $region52
        $region51: #{tpu_custom_call.1} parent=11 // pred_region
          _
        $region52: #{tpu_custom_call.1} parent=11 // pred_fallthru
          _
        // Predicated region
        $region53: #{tpu_custom_call.1} parent=11 // pred_check
          %p429 = pneg %p293
        $region54: #{tpu_custom_call.1} parent=11 // pred_check_branch
          %431 = sbr.rel (%p429) target = $region56
        $region55: #{tpu_custom_call.1} parent=11 // pred_region
          _
        $region56: #{tpu_custom_call.1} parent=11 // pred_fallthru
          _
        // Predicated region
        $region57: #{tpu_custom_call.1} parent=11 // pred_check
          %p432 = pneg %p314
        $region58: #{tpu_custom_call.1} parent=11 // pred_check_branch
          %434 = sbr.rel (%p432) target = $region60
        $region59: #{tpu_custom_call.1} parent=11 // pred_region
          _
        $region60: #{tpu_custom_call.1} parent=11 // pred_fallthru
          _
        // Predicated region
        $region61: #{tpu_custom_call.1} parent=11 // pred_check
          %p435 = pneg %p335
        $region62: #{tpu_custom_call.1} parent=11 // pred_check_branch
          %437 = sbr.rel (%p435) target = $region64
        $region63: #{tpu_custom_call.1} parent=11 // pred_region
          _
        $region64: #{tpu_custom_call.1} parent=11 // pred_fallthru
          _
        // Predicated region
        $region65: #{tpu_custom_call.1} parent=11 // pred_check
          %p438 = pneg %p356
        $region66: #{tpu_custom_call.1} parent=11 // pred_check_branch
          %440 = sbr.rel (%p438) target = $region68
        $region67: #{tpu_custom_call.1} parent=11 // pred_region
          _
        $region68: #{tpu_custom_call.1} parent=11 // pred_fallthru
          _
      $region12: #{tpu_custom_call.1} parent=5 // pred_fallthru
        _
      %p441 = scmp.lt.s32.totalorder %s24, 2
      // Predicated region
      $region69: #{tpu_custom_call.1} parent=5 // pred_check
        %p442 = pneg %p441
      $region70: #{tpu_custom_call.1} parent=5 // pred_check_branch
        %444 = sbr.rel (%p442) target = $region72
      $region71: #{tpu_custom_call.1} parent=5 // pred_region
        // Predicated region
        $region73: #{tpu_custom_call.1} parent=71 // pred_check
          %p445 = pneg %p56
        $region74: #{tpu_custom_call.1} parent=71 // pred_check_branch
          %447 = sbr.rel (%p445) target = $region76
        $region75: #{tpu_custom_call.1} parent=71 // pred_region
          %p448 = scmp.lt.s32.totalorder %s31, 1
          %s449 = scalar_select %p448, %s31, 1
          %s450 = smul.addr %s449, 8
          %s451 = scalar_lea.vmem %s0, %s450
        $region76: #{tpu_custom_call.1} parent=71 // pred_fallthru
          _
      $region72: #{tpu_custom_call.1} parent=5 // pred_fallthru
        _
      %p452 = scmp.le.s32.totalorder 1, %s24
      %p453 = scmp.lt.s32.totalorder %s24, 3
      %p454 = pnand %p452, %p453
      %p455 = pneg %p454
      // Predicated region
      $region77: #{tpu_custom_call.1} parent=5 // pred_check
        _
      $region78: #{tpu_custom_call.1} parent=5 // pred_check_branch
        %457 = sbr.rel (%p454) target = $region80
      $region79: #{tpu_custom_call.1} parent=5 // pred_region
        %s458 = ssub.s32 %s24, 1
        %p459 = scmp.lt.s32.totalorder %s33, 1
        %s460 = scalar_select %p459, %s33, 1
        %s461 = smul.addr %s460, 8
        %s462 = scalar_lea.vmem %s0, %s461
        %p463 = pneg %p62
        %p464 = pneg %p59
        %p465 = pneg %p83
        %p466 = pneg %p80
        %p467 = pneg %p104
        %p468 = pneg %p101
        %p469 = pneg %p125
        %p470 = pneg %p122
        %p471 = pneg %p146
        %p472 = pneg %p143
        %p473 = pneg %p167
        %p474 = pneg %p164
        %p475 = pneg %p188
        %p476 = pneg %p185
        %p477 = pneg %p209
        %p478 = pneg %p206
        %p479 = pneg %p230
        %p480 = pneg %p227
        %p481 = pneg %p251
        %p482 = pneg %p248
        %p483 = pneg %p272
        %p484 = pneg %p269
        %p485 = pneg %p293
        %p486 = pneg %p290
        %p487 = pneg %p314
        %p488 = pneg %p311
        %p489 = pneg %p335
        %p490 = pneg %p332
        %p491 = pneg %p356
        %p492 = pneg %p353
        %p493 = pneg %p384
        %p494 = pneg %p381
        %s495 = sand.u32 %s371, 1
        %s496 = scalar_lea.sflag [#allocation5], %s495
        %s497 = sand.u32 %s371, 1
        %s498 = smul.addr %s497, 8
        %s499 = scalar_lea.vmem [#allocation4], %s498
        %p500 = scmp.lt.s32.totalorder %s33, 1
        %s501 = scalar_select %p500, %s33, 1
        %s502 = smul.addr %s501, 8
        %s503 = scalar_lea.vmem %s0, %s502
        %p505 = scmp.eq.s32.totalorder %s34, 0
        // Predicated region
        $region81: #{tpu_custom_call.1} parent=79 // pred_check
          %p506 = pneg %p505
        $region82: #{tpu_custom_call.1} parent=79 // pred_check_branch
          %508 = sbr.rel (%p506) target = $region84
        $region83: #{tpu_custom_call.1} parent=79 // pred_region
          %v509 = vld [vmem:[%s503] sm:$0xff]
          %v510 = vld [vmem:[%s1] sm:$0x1]
          %v511 = vld [vmem:[%s2] sm:$0x1]
          %vm512 = vcmask 261120
          %v513 = vsel %vm512, %v509, 0.0
          %514 = vadd.xlane.f32.xlu0 %v513
          %v515 = vpop.xlane.xlu0 %514
          %v516 = vrcp.pop 32.0
          %v517 = vmul.f32 %v515, %v516
          %v518 = vsub.f32 %v509, %v517
          %v519 = vmul.f32 %v518, %v518
          %v520 = vsel %vm512, %v519, 0.0
          %521 = vadd.xlane.f32.xlu0 %v520
          %v522 = vpop.xlane.xlu0 %521
          %v523 = vmul.f32 %v522, %v516
          %v524 = vadd.f32 %v523, 1e-05
          %v525 = vrsqrt.pop %v524
          %v526 = vmul.f32 %v518, %v525
          %v528 = vlaneseq
          %v529 = vshrl.u32 %v528, 7
          %v530 = vsub.s32 0, %v529
          %v531 = vrot.slane %v510, %v530
          %v533 = vmul.f32 %v526, %v531
          %v535 = vlaneseq
          %v536 = vshrl.u32 %v535, 7
          %v537 = vsub.s32 0, %v536
          %v538 = vrot.slane %v511, %v537
          %v540 = vadd.f32 %v533, %v538
          %v541 = vpack.c.bf16 %v540, %v540
          %v542 = vld [vmem:[%s5] sm:$0xf]
          %v543 = vld [vmem:[%s5 + $0x4] sm:$0xf]
          %v544 = vld [vmem:[%s5 + $0x8] sm:$0xf]
          %v545 = vld [vmem:[%s5 + $0xc] sm:$0xf]
          %v546 = vld [vmem:[%s6] sm:$0x1]
          %v548 = vlaneseq
          %v549 = vshrl.u32 %v548, 7
          %v550 = vsub.s32 0, %v549
          %v551 = vrot.slane %v546, %v550
          %v557 = vunpack.c.l.b16 %v542
          %v558 = vunpack.c.l.b16 %v543
          %v559 = vunpack.c.l.b16 %v544
          %v560 = vunpack.c.l.b16 %v545
          %v561 = vpack.c.b16 %v558, %v557
          %v562 = vpack.c.b16 %v560, %v559
          %v566 = vsel %vm512, %v541, 0
          %568 = vmatprep.subr.bf16.mxu0 0
          %569 = vmatpush1.bf16.msra.mxu0 %v561
          %570 = vmatprep.subr.bf16.mxu0 0
          %571 = vmatpush1.bf16.msra.mxu0 %v562
          %572 = vmatprep.subr.bf16.mxu0 0
          %573 = vmatpush1.bf16.msra.mxu0 0
          %574 = vmatprep.subr.bf16.mxu0 0
          %575 = vmatpush1.bf16.msra.mxu0 0
          %576 = vmatprep.subr.bf16.mxu0 0
          %577 = vmatpush1.bf16.msra.mxu0 0
          %578 = vmatprep.subr.bf16.mxu0 0
          %579 = vmatpush1.bf16.msra.mxu0 0
          %580 = vmatprep.subr.bf16.mxu0 0
          %581 = vmatpush1.bf16.msra.mxu0 0
          %582 = vmatprep.subr.bf16.mxu0 0
          %583 = vmatpush1.bf16.msra.mxu0 0
          %584 = vmatprep.subr.bf16.mxu0 0
          %585 = vmatpush1.bf16.msra.mxu0 0
          %586 = vmatprep.subr.bf16.mxu0 0
          %587 = vmatpush1.bf16.msra.mxu0 0
          %588 = vmatprep.subr.bf16.mxu0 0
          %589 = vmatpush1.bf16.msra.mxu0 0
          %590 = vmatprep.subr.bf16.mxu0 0
          %591 = vmatpush1.bf16.msra.mxu0 0
          %592 = vmatprep.subr.bf16.mxu0 0
          %593 = vmatpush1.bf16.msra.mxu0 0
          %594 = vmatprep.subr.bf16.mxu0 0
          %595 = vmatpush1.bf16.msra.mxu0 0
          %596 = vmatprep.subr.bf16.mxu0 0
          %597 = vmatpush1.bf16.msra.mxu0 0
          %598 = vmatprep.subr.bf16.mxu0 0
          %599 = vmatpush1.bf16.msra.mxu0 0
          %600 = vmatprep.mubr.bf16.mxu0 0
          %601 = vmatmul.mubr.bf16.gmra.mrb[0].mxu0 %v566
          %v602 = vpop.f32.mrb[0].mxu0
          %v603 = vadd.f32 %v551, %v602
          %v604 = vpop.f32.mrb[0].mxu0
          %v605 = vpop.f32.mrb[0].mxu0
          %v606 = vpop.f32.mrb[0].mxu0
          %607 = vdwg.mxu0
          %v608 = vpack.c.bf16 %v603, %v603
          %vm609 = vcmask 60416
          %610 = vst.msk [vmem:[#allocation2] sm:$0xf] %vm609, %v608
          %v612 = vunpack.c.l.b16 %v608
          %v613 = vpack.c.b16 %v612, %v612
          %614 = vrot.lane.b32.xlu0 %v613, 96
          %v615 = vpop.permute.xlu0 %614
          %617 = vst.msk [vmem:[#allocation3] sm:$0xf] %vm609, %v615
          %618 = vrot.lane.b32.xlu0 %v613, 120
          %v619 = vpop.permute.xlu0 %618
          %s621 = scalar_lea.vmem [#allocation2], 4
          %622 = vst.msk [vmem:[%s621] sm:$0xf] %vm609, %v619
          %623 = vrot.lane.b32.xlu0 %v613, 88
          %v624 = vpop.permute.xlu0 %623
          %s626 = scalar_lea.vmem [#allocation3], 4
          %627 = vst.msk [vmem:[%s626] sm:$0xf] %vm609, %v624
          %628 = vrot.lane.b32.xlu0 %v613, 112
          %v629 = vpop.permute.xlu0 %628
          %s631 = scalar_lea.vmem [#allocation2], 8
          %632 = vst.msk [vmem:[%s631] sm:$0xf] %vm609, %v629
          %633 = vrot.lane.b32.xlu0 %v613, 80
          %v634 = vpop.permute.xlu0 %633
          %s636 = scalar_lea.vmem [#allocation3], 8
          %637 = vst.msk [vmem:[%s636] sm:$0xf] %vm609, %v634
          %638 = vrot.lane.b32.xlu0 %v613, 104
          %v639 = vpop.permute.xlu0 %638
          %s641 = scalar_lea.vmem [#allocation2], 12
          %642 = vst.msk [vmem:[%s641] sm:$0xf] %vm609, %v639
          %643 = vrot.lane.b32.xlu0 %v613, 72
          %v644 = vpop.permute.xlu0 %643
          %s646 = scalar_lea.vmem [#allocation3], 12
          %647 = vst.msk [vmem:[%s646] sm:$0xf] %vm609, %v644
        $region84: #{tpu_custom_call.1} parent=79 // pred_fallthru
          _
        %s648 = smul.u32 %s34, 8
        %s649 = scalar_lea.vmem %s503, %s648
        %v650 = vld [vmem:[%s649] sm:$0xff]
        %v651 = vld [vmem:[%s1] sm:$0x1]
        %v652 = vld [vmem:[%s2] sm:$0x1]
        %vm653 = vcmask 261120
        %v654 = vsel %vm653, %v650, 0.0
        %655 = vadd.xlane.f32.xlu0 %v654
        %v656 = vpop.xlane.xlu0 %655
        %v657 = vrcp.pop 32.0
        %v658 = vmul.f32 %v656, %v657
        %v659 = vsub.f32 %v650, %v658
        %v660 = vmul.f32 %v659, %v659
        %v661 = vsel %vm653, %v660, 0.0
        %662 = vadd.xlane.f32.xlu0 %v661
        %v663 = vpop.xlane.xlu0 %662
        %v664 = vmul.f32 %v663, %v657
        %v665 = vadd.f32 %v664, 1e-05
        %v666 = vrsqrt.pop %v665
        %v667 = vmul.f32 %v659, %v666
        %v669 = vlaneseq
        %v670 = vshrl.u32 %v669, 7
        %v671 = vsub.s32 0, %v670
        %v672 = vrot.slane %v651, %v671
        %v674 = vmul.f32 %v667, %v672
        %v676 = vlaneseq
        %v677 = vshrl.u32 %v676, 7
        %v678 = vsub.s32 0, %v677
        %v679 = vrot.slane %v652, %v678
        %v681 = vadd.f32 %v674, %v679
        %v682 = vpack.c.bf16 %v681, %v681
        %v683 = vld [vmem:[%s3] sm:$0xf]
        %v684 = vld [vmem:[%s3 + $0x4] sm:$0xf]
        %v685 = vld [vmem:[%s3 + $0x8] sm:$0xf]
        %v686 = vld [vmem:[%s3 + $0xc] sm:$0xf]
        %v687 = vld [vmem:[%s4] sm:$0x1]
        %v689 = vlaneseq
        %v690 = vshrl.u32 %v689, 7
        %v691 = vsub.s32 0, %v690
        %v692 = vrot.slane %v687, %v691
        %v698 = vunpack.c.l.b16 %v683
        %v699 = vunpack.c.l.b16 %v684
        %v700 = vunpack.c.l.b16 %v685
        %v701 = vunpack.c.l.b16 %v686
        %v702 = vpack.c.b16 %v699, %v698
        %v703 = vpack.c.b16 %v701, %v700
        %v707 = vsel %vm653, %v682, 0
        %709 = vmatprep.subr.bf16.mxu0 0
        %710 = vmatpush1.bf16.msra.mxu0 %v702
        %711 = vmatprep.subr.bf16.mxu0 0
        %712 = vmatpush1.bf16.msra.mxu0 %v703
        %713 = vmatprep.subr.bf16.mxu0 0
        %714 = vmatpush1.bf16.msra.mxu0 0
        %715 = vmatprep.subr.bf16.mxu0 0
        %716 = vmatpush1.bf16.msra.mxu0 0
        %717 = vmatprep.subr.bf16.mxu0 0
        %718 = vmatpush1.bf16.msra.mxu0 0
        %719 = vmatprep.subr.bf16.mxu0 0
        %720 = vmatpush1.bf16.msra.mxu0 0
        %721 = vmatprep.subr.bf16.mxu0 0
        %722 = vmatpush1.bf16.msra.mxu0 0
        %723 = vmatprep.subr.bf16.mxu0 0
        %724 = vmatpush1.bf16.msra.mxu0 0
        %725 = vmatprep.subr.bf16.mxu0 0
        %726 = vmatpush1.bf16.msra.mxu0 0
        %727 = vmatprep.subr.bf16.mxu0 0
        %728 = vmatpush1.bf16.msra.mxu0 0
        %729 = vmatprep.subr.bf16.mxu0 0
        %730 = vmatpush1.bf16.msra.mxu0 0
        %731 = vmatprep.subr.bf16.mxu0 0
        %732 = vmatpush1.bf16.msra.mxu0 0
        %733 = vmatprep.subr.bf16.mxu0 0
        %734 = vmatpush1.bf16.msra.mxu0 0
        %735 = vmatprep.subr.bf16.mxu0 0
        %736 = vmatpush1.bf16.msra.mxu0 0
        %737 = vmatprep.subr.bf16.mxu0 0
        %738 = vmatpush1.bf16.msra.mxu0 0
        %739 = vmatprep.subr.bf16.mxu0 0
        %740 = vmatpush1.bf16.msra.mxu0 0
        %741 = vmatprep.mubr.bf16.mxu0 0
        %742 = vmatmul.mubr.bf16.gmra.mrb[0].mxu0 %v707
        %v743 = vpop.f32.mrb[0].mxu0
        %v744 = vadd.f32 %v692, %v743
        %v745 = vpop.f32.mrb[0].mxu0
        %v746 = vpop.f32.mrb[0].mxu0
        %v747 = vpop.f32.mrb[0].mxu0
        %748 = vdwg.mxu0
        %v749 = vpack.c.bf16 %v744, %v744
        %v750 = vld [vmem:[#allocation2] sm:$0xf]
        %vm751 = vcmask 64512
        %v753 = vsel %vm751, %v749, 0
        %v756 = vsel %vm751, %v750, 0
        %758 = vmatprep.subr.bf16.mxu0 0
        %759 = vmatpush1.bf16.xpose.msra.mxu0 %v756
        %760 = vmatprep.subr.bf16.mxu0 0
        %761 = vmatpush1.bf16.xpose.msra.mxu0 0
        %762 = vmatprep.subr.bf16.mxu0 0
        %763 = vmatpush1.bf16.xpose.msra.mxu0 0
        %764 = vmatprep.subr.bf16.mxu0 0
        %765 = vmatpush1.bf16.xpose.msra.mxu0 0
        %766 = vmatprep.subr.bf16.mxu0 0
        %767 = vmatpush1.bf16.xpose.msra.mxu0 0
        %768 = vmatprep.subr.bf16.mxu0 0
        %769 = vmatpush1.bf16.xpose.msra.mxu0 0
        %770 = vmatprep.subr.bf16.mxu0 0
        %771 = vmatpush1.bf16.xpose.msra.mxu0 0
        %772 = vmatprep.subr.bf16.mxu0 0
        %773 = vmatpush1.bf16.xpose.msra.mxu0 0
        %774 = vmatprep.subr.bf16.mxu0 0
        %775 = vmatpush1.bf16.xpose.msra.mxu0 0
        %776 = vmatprep.subr.bf16.mxu0 0
        %777 = vmatpush1.bf16.xpose.msra.mxu0 0
        %778 = vmatprep.subr.bf16.mxu0 0
        %779 = vmatpush1.bf16.xpose.msra.mxu0 0
        %780 = vmatprep.subr.bf16.mxu0 0
        %781 = vmatpush1.bf16.xpose.msra.mxu0 0
        %782 = vmatprep.subr.bf16.mxu0 0
        %783 = vmatpush1.bf16.xpose.msra.mxu0 0
        %784 = vmatprep.subr.bf16.mxu0 0
        %785 = vmatpush1.bf16.xpose.msra.mxu0 0
        %786 = vmatprep.subr.bf16.mxu0 0
        %787 = vmatpush1.bf16.xpose.msra.mxu0 0
        %788 = vmatprep.subr.bf16.mxu0 0
        %789 = vmatpush1.bf16.xpose.msra.mxu0 0
        %790 = vmatprep.mubr.bf16.mxu0 0
        %791 = vmatmul.mubr.bf16.gmra.mrb[0].mxu0 %v753
        %v792 = vpop.f32.mrb[0].mxu0
        %v793 = vadd.f32 0.0, %v792
        %v794 = vpop.f32.mrb[0].mxu0
        %v795 = vpop.f32.mrb[0].mxu0
        %v796 = vpop.f32.mrb[0].mxu0
        %797 = vdwg.mxu0
        %v798 = vsel %vm751, %v793, -inf
        %799 = vmax.xlane.f32.xlu0 %v798
        %v800 = vpop.xlane.xlu0 %799
        %v801 = vsub.f32 %v793, %v800
        %v802 = vmul.f32 %v801, 1.442695
        %v803 = vpow.pop %v802
        %v804 = vsel %vm751, %v803, 0.0
        %805 = vadd.xlane.f32.xlu0 %v804
        %v806 = vpop.xlane.xlu0 %805
        %v807 = vrcp.pop %v806
        %v808 = vmul.f32 %v803, %v807
        %v809 = vpack.c.bf16 %v808, %v808
        %v810 = vld [vmem:[#allocation3] sm:$0xf]
        %v812 = vsel %vm751, %v809, 0
        %vm814 = vcmask 1043456
        %v816 = vsel %vm814, %v810, 0
        %818 = vmatprep.subr.bf16.mxu0 0
        %819 = vmatpush1.bf16.msra.mxu0 %v816
        %820 = vmatprep.subr.bf16.mxu0 0
        %821 = vmatpush1.bf16.msra.mxu0 0
        %822 = vmatprep.subr.bf16.mxu0 0
        %823 = vmatpush1.bf16.msra.mxu0 0
        %824 = vmatprep.subr.bf16.mxu0 0
        %825 = vmatpush1.bf16.msra.mxu0 0
        %826 = vmatprep.subr.bf16.mxu0 0
        %827 = vmatpush1.bf16.msra.mxu0 0
        %828 = vmatprep.subr.bf16.mxu0 0
        %829 = vmatpush1.bf16.msra.mxu0 0
        %830 = vmatprep.subr.bf16.mxu0 0
        %831 = vmatpush1.bf16.msra.mxu0 0
        %832 = vmatprep.subr.bf16.mxu0 0
        %833 = vmatpush1.bf16.msra.mxu0 0
        %834 = vmatprep.subr.bf16.mxu0 0
        %835 = vmatpush1.bf16.msra.mxu0 0
        %836 = vmatprep.subr.bf16.mxu0 0
        %837 = vmatpush1.bf16.msra.mxu0 0
        %838 = vmatprep.subr.bf16.mxu0 0
        %839 = vmatpush1.bf16.msra.mxu0 0
        %840 = vmatprep.subr.bf16.mxu0 0
        %841 = vmatpush1.bf16.msra.mxu0 0
        %842 = vmatprep.subr.bf16.mxu0 0
        %843 = vmatpush1.bf16.msra.mxu0 0
        %844 = vmatprep.subr.bf16.mxu0 0
        %845 = vmatpush1.bf16.msra.mxu0 0
        %846 = vmatprep.subr.bf16.mxu0 0
        %847 = vmatpush1.bf16.msra.mxu0 0
        %848 = vmatprep.subr.bf16.mxu0 0
        %849 = vmatpush1.bf16.msra.mxu0 0
        %850 = vmatprep.mubr.bf16.mxu0 0
        %851 = vmatmul.mubr.bf16.gmra.mrb[0].mxu0 %v812
        %v852 = vpop.f32.mrb[0].mxu0
        %v853 = vadd.f32 0.0, %v852
        %v854 = vpop.f32.mrb[0].mxu0
        %v855 = vpop.f32.mrb[0].mxu0
        %v856 = vpop.f32.mrb[0].mxu0
        %857 = vdwg.mxu0
        %v858 = vpack.c.bf16 %v853, %v853
        %v859 = vld [vmem:[%s7] sm:$0xf]
        %s860 = scalar_lea.vmem [#allocation2], 4
        %v861 = vld [vmem:[%s860] sm:$0xf]
        %863 = vrot.lane.b32.xlu0 %v749, 120
        %v864 = vpop.permute.xlu0 %863
        %v866 = vsel %vm751, %v864, 0
        %v869 = vsel %vm751, %v861, 0
        %871 = vmatprep.subr.bf16.mxu0 0
        %872 = vmatpush1.bf16.xpose.msra.mxu0 %v869
        %873 = vmatprep.subr.bf16.mxu0 0
        %874 = vmatpush1.bf16.xpose.msra.mxu0 0
        %875 = vmatprep.subr.bf16.mxu0 0
        %876 = vmatpush1.bf16.xpose.msra.mxu0 0
        %877 = vmatprep.subr.bf16.mxu0 0
        %878 = vmatpush1.bf16.xpose.msra.mxu0 0
        %879 = vmatprep.subr.bf16.mxu0 0
        %880 = vmatpush1.bf16.xpose.msra.mxu0 0
        %881 = vmatprep.subr.bf16.mxu0 0
        %882 = vmatpush1.bf16.xpose.msra.mxu0 0
        %883 = vmatprep.subr.bf16.mxu0 0
        %884 = vmatpush1.bf16.xpose.msra.mxu0 0
        %885 = vmatprep.subr.bf16.mxu0 0
        %886 = vmatpush1.bf16.xpose.msra.mxu0 0
        %887 = vmatprep.subr.bf16.mxu0 0
        %888 = vmatpush1.bf16.xpose.msra.mxu0 0
        %889 = vmatprep.subr.bf16.mxu0 0
        %890 = vmatpush1.bf16.xpose.msra.mxu0 0
        %891 = vmatprep.subr.bf16.mxu0 0
        %892 = vmatpush1.bf16.xpose.msra.mxu0 0
        %893 = vmatprep.subr.bf16.mxu0 0
        %894 = vmatpush1.bf16.xpose.msra.mxu0 0
        %895 = vmatprep.subr.bf16.mxu0 0
        %896 = vmatpush1.bf16.xpose.msra.mxu0 0
        %897 = vmatprep.subr.bf16.mxu0 0
        %898 = vmatpush1.bf16.xpose.msra.mxu0 0
        %899 = vmatprep.subr.bf16.mxu0 0
        %900 = vmatpush1.bf16.xpose.msra.mxu0 0
        %901 = vmatprep.subr.bf16.mxu0 0
        %902 = vmatpush1.bf16.xpose.msra.mxu0 0
        %903 = vmatprep.mubr.bf16.mxu0 0
        %904 = vmatmul.mubr.bf16.gmra.mrb[0].mxu0 %v866
        %v905 = vpop.f32.mrb[0].mxu0
        %v906 = vadd.f32 0.0, %v905
        %v907 = vpop.f32.mrb[0].mxu0
        %v908 = vpop.f32.mrb[0].mxu0
        %v909 = vpop.f32.mrb[0].mxu0
        %910 = vdwg.mxu0
        %v911 = vsel %vm751, %v906, -inf
        %912 = vmax.xlane.f32.xlu0 %v911
        %v913 = vpop.xlane.xlu0 %912
        %v914 = vsub.f32 %v906, %v913
        %v915 = vmul.f32 %v914, 1.442695
        %v916 = vpow.pop %v915
        %v917 = vsel %vm751, %v916, 0.0
        %918 = vadd.xlane.f32.xlu0 %v917
        %v919 = vpop.xlane.xlu0 %918
        %v920 = vrcp.pop %v919
        %v921 = vmul.f32 %v916, %v920
        %v922 = vpack.c.bf16 %v921, %v921
        %s923 = scalar_lea.vmem [#allocation3], 4
        %v924 = vld [vmem:[%s923] sm:$0xf]
        %v926 = vsel %vm751, %v922, 0
        %v929 = vsel %vm814, %v924, 0
        %931 = vmatprep.subr.bf16.mxu0 0
        %932 = vmatpush1.bf16.msra.mxu0 %v929
        %933 = vmatprep.subr.bf16.mxu0 0
        %934 = vmatpush1.bf16.msra.mxu0 0
        %935 = vmatprep.subr.bf16.mxu0 0
        %936 = vmatpush1.bf16.msra.mxu0 0
        %937 = vmatprep.subr.bf16.mxu0 0
        %938 = vmatpush1.bf16.msra.mxu0 0
        %939 = vmatprep.subr.bf16.mxu0 0
        %940 = vmatpush1.bf16.msra.mxu0 0
        %941 = vmatprep.subr.bf16.mxu0 0
        %942 = vmatpush1.bf16.msra.mxu0 0
        %943 = vmatprep.subr.bf16.mxu0 0
        %944 = vmatpush1.bf16.msra.mxu0 0
        %945 = vmatprep.subr.bf16.mxu0 0
        %946 = vmatpush1.bf16.msra.mxu0 0
        %947 = vmatprep.subr.bf16.mxu0 0
        %948 = vmatpush1.bf16.msra.mxu0 0
        %949 = vmatprep.subr.bf16.mxu0 0
        %950 = vmatpush1.bf16.msra.mxu0 0
        %951 = vmatprep.subr.bf16.mxu0 0
        %952 = vmatpush1.bf16.msra.mxu0 0
        %953 = vmatprep.subr.bf16.mxu0 0
        %954 = vmatpush1.bf16.msra.mxu0 0
        %955 = vmatprep.subr.bf16.mxu0 0
        %956 = vmatpush1.bf16.msra.mxu0 0
        %957 = vmatprep.subr.bf16.mxu0 0
        %958 = vmatpush1.bf16.msra.mxu0 0
        %959 = vmatprep.subr.bf16.mxu0 0
        %960 = vmatpush1.bf16.msra.mxu0 0
        %961 = vmatprep.subr.bf16.mxu0 0
        %962 = vmatpush1.bf16.msra.mxu0 0
        %963 = vmatprep.mubr.bf16.mxu0 0
        %964 = vmatmul.mubr.bf16.gmra.mrb[0].mxu0 %v926
        %v965 = vpop.f32.mrb[0].mxu0
        %v966 = vadd.f32 0.0, %v965
        %v967 = vpop.f32.mrb[0].mxu0
        %v968 = vpop.f32.mrb[0].mxu0
        %v969 = vpop.f32.mrb[0].mxu0
        %970 = vdwg.mxu0
        %v971 = vpack.c.bf16 %v966, %v966
        %s972 = scalar_lea.vmem %s7, 4
        %v973 = vld [vmem:[%s972] sm:$0xf]
        %v975 = vsel %vm751, %v971, 0
        %v978 = vsel %vm814, %v973, 0
        %980 = vmatprep.subr.bf16.mxu0 0
        %981 = vmatpush1.bf16.msra.mxu0 %v978
        %982 = vmatprep.subr.bf16.mxu0 0
        %983 = vmatpush1.bf16.msra.mxu0 0
        %984 = vmatprep.subr.bf16.mxu0 0
        %985 = vmatpush1.bf16.msra.mxu0 0
        %986 = vmatprep.subr.bf16.mxu0 0
        %987 = vmatpush1.bf16.msra.mxu0 0
        %988 = vmatprep.subr.bf16.mxu0 0
        %989 = vmatpush1.bf16.msra.mxu0 0
        %990 = vmatprep.subr.bf16.mxu0 0
        %991 = vmatpush1.bf16.msra.mxu0 0
        %992 = vmatprep.subr.bf16.mxu0 0
        %993 = vmatpush1.bf16.msra.mxu0 0
        %994 = vmatprep.subr.bf16.mxu0 0
        %995 = vmatpush1.bf16.msra.mxu0 0
        %996 = vmatprep.subr.bf16.mxu0 0
        %997 = vmatpush1.bf16.msra.mxu0 0
        %998 = vmatprep.subr.bf16.mxu0 0
        %999 = vmatpush1.bf16.msra.mxu0 0
        %1000 = vmatprep.subr.bf16.mxu0 0
        %1001 = vmatpush1.bf16.msra.mxu0 0
        %1002 = vmatprep.subr.bf16.mxu0 0
        %1003 = vmatpush1.bf16.msra.mxu0 0
        %1004 = vmatprep.subr.bf16.mxu0 0
        %1005 = vmatpush1.bf16.msra.mxu0 0
        %1006 = vmatprep.subr.bf16.mxu0 0
        %1007 = vmatpush1.bf16.msra.mxu0 0
        %1008 = vmatprep.subr.bf16.mxu0 0
        %1009 = vmatpush1.bf16.msra.mxu0 0
        %1010 = vmatprep.subr.bf16.mxu0 0
        %1011 = vmatpush1.bf16.msra.mxu0 0
        %1012 = vmatprep.mubr.bf16.mxu0 0
        %1013 = vmatmul.mubr.bf16.gmra.mrb[0].mxu0 %v975
        %v1014 = vpop.f32.mrb[0].mxu0
        %v1015 = vadd.f32 0.0, %v1014
        %v1016 = vpop.f32.mrb[0].mxu0
        %v1017 = vpop.f32.mrb[0].mxu0
        %v1018 = vpop.f32.mrb[0].mxu0
        %1019 = vdwg.mxu0
        %v1021 = vsel %vm751, %v858, 0
        %v1024 = vsel %vm814, %v859, 0
        %1026 = vmatprep.subr.bf16.mxu0 0
        %1027 = vmatpush1.bf16.msra.mxu0 %v1024
        %1028 = vmatprep.subr.bf16.mxu0 0
        %1029 = vmatpush1.bf16.msra.mxu0 0
        %1030 = vmatprep.subr.bf16.mxu0 0
        %1031 = vmatpush1.bf16.msra.mxu0 0
        %1032 = vmatprep.subr.bf16.mxu0 0
        %1033 = vmatpush1.bf16.msra.mxu0 0
        %1034 = vmatprep.subr.bf16.mxu0 0
        %1035 = vmatpush1.bf16.msra.mxu0 0
        %1036 = vmatprep.subr.bf16.mxu0 0
        %1037 = vmatpush1.bf16.msra.mxu0 0
        %1038 = vmatprep.subr.bf16.mxu0 0
        %1039 = vmatpush1.bf16.msra.mxu0 0
        %1040 = vmatprep.subr.bf16.mxu0 0
        %1041 = vmatpush1.bf16.msra.mxu0 0
        %1042 = vmatprep.subr.bf16.mxu0 0
        %1043 = vmatpush1.bf16.msra.mxu0 0
        %1044 = vmatprep.subr.bf16.mxu0 0
        %1045 = vmatpush1.bf16.msra.mxu0 0
        %1046 = vmatprep.subr.bf16.mxu0 0
        %1047 = vmatpush1.bf16.msra.mxu0 0
        %1048 = vmatprep.subr.bf16.mxu0 0
        %1049 = vmatpush1.bf16.msra.mxu0 0
        %1050 = vmatprep.subr.bf16.mxu0 0
        %1051 = vmatpush1.bf16.msra.mxu0 0
        %1052 = vmatprep.subr.bf16.mxu0 0
        %1053 = vmatpush1.bf16.msra.mxu0 0
        %1054 = vmatprep.subr.bf16.mxu0 0
        %1055 = vmatpush1.bf16.msra.mxu0 0
        %1056 = vmatprep.subr.bf16.mxu0 0
        %1057 = vmatpush1.bf16.msra.mxu0 0
        %1058 = vmatprep.mubr.bf16.mxu0 0
        %1059 = vmatmul.mubr.bf16.gmra.mrb[0].mxu0 %v1021
        %v1060 = vpop.f32.mrb[0].mxu0
        %v1061 = vadd.f32 %v1015, %v1060
        %v1062 = vpop.f32.mrb[0].mxu0
        %v1063 = vpop.f32.mrb[0].mxu0
        %v1064 = vpop.f32.mrb[0].mxu0
        %1065 = vdwg.mxu0
        %s1066 = scalar_lea.vmem [#allocation2], 8
        %v1067 = vld [vmem:[%s1066] sm:$0xf]
        %1068 = vrot.lane.b32.xlu0 %v749, 112
        %v1069 = vpop.permute.xlu0 %1068
        %v1071 = vsel %vm751, %v1069, 0
        %v1074 = vsel %vm751, %v1067, 0
        %1076 = vmatprep.subr.bf16.mxu0 0
        %1077 = vmatpush1.bf16.xpose.msra.mxu0 %v1074
        %1078 = vmatprep.subr.bf16.mxu0 0
        %1079 = vmatpush1.bf16.xpose.msra.mxu0 0
        %1080 = vmatprep.subr.bf16.mxu0 0
        %1081 = vmatpush1.bf16.xpose.msra.mxu0 0
        %1082 = vmatprep.subr.bf16.mxu0 0
        %1083 = vmatpush1.bf16.xpose.msra.mxu0 0
        %1084 = vmatprep.subr.bf16.mxu0 0
        %1085 = vmatpush1.bf16.xpose.msra.mxu0 0
        %1086 = vmatprep.subr.bf16.mxu0 0
        %1087 = vmatpush1.bf16.xpose.msra.mxu0 0
        %1088 = vmatprep.subr.bf16.mxu0 0
        %1089 = vmatpush1.bf16.xpose.msra.mxu0 0
        %1090 = vmatprep.subr.bf16.mxu0 0
        %1091 = vmatpush1.bf16.xpose.msra.mxu0 0
        %1092 = vmatprep.subr.bf16.mxu0 0
        %1093 = vmatpush1.bf16.xpose.msra.mxu0 0
        %1094 = vmatprep.subr.bf16.mxu0 0
        %1095 = vmatpush1.bf16.xpose.msra.mxu0 0
        %1096 = vmatprep.subr.bf16.mxu0 0
        %1097 = vmatpush1.bf16.xpose.msra.mxu0 0
        %1098 = vmatprep.subr.bf16.mxu0 0
        %1099 = vmatpush1.bf16.xpose.msra.mxu0 0
        %1100 = vmatprep.subr.bf16.mxu0 0
        %1101 = vmatpush1.bf16.xpose.msra.mxu0 0
        %1102 = vmatprep.subr.bf16.mxu0 0
        %1103 = vmatpush1.bf16.xpose.msra.mxu0 0
        %1104 = vmatprep.subr.bf16.mxu0 0
        %1105 = vmatpush1.bf16.xpose.msra.mxu0 0
        %1106 = vmatprep.subr.bf16.mxu0 0
        %1107 = vmatpush1.bf16.xpose.msra.mxu0 0
        %1108 = vmatprep.mubr.bf16.mxu0 0
        %1109 = vmatmul.mubr.bf16.gmra.mrb[0].mxu0 %v1071
        %v1110 = vpop.f32.mrb[0].mxu0
        %v1111 = vadd.f32 0.0, %v1110
        %v1112 = vpop.f32.mrb[0].mxu0
        %v1113 = vpop.f32.mrb[0].mxu0
        %v1114 = vpop.f32.mrb[0].mxu0
        %1115 = vdwg.mxu0
        %v1116 = vsel %vm751, %v1111, -inf
        %1117 = vmax.xlane.f32.xlu0 %v1116
        %v1118 = vpop.xlane.xlu0 %1117
        %v1119 = vsub.f32 %v1111, %v1118
        %v1120 = vmul.f32 %v1119, 1.442695
        %v1121 = vpow.pop %v1120
        %v1122 = vsel %vm751, %v1121, 0.0
        %1123 = vadd.xlane.f32.xlu0 %v1122
        %v1124 = vpop.xlane.xlu0 %1123
        %v1125 = vrcp.pop %v1124
        %v1126 = vmul.f32 %v1121, %v1125
        %v1127 = vpack.c.bf16 %v1126, %v1126
        %s1128 = scalar_lea.vmem [#allocation3], 8
        %v1129 = vld [vmem:[%s1128] sm:$0xf]
        %v1131 = vsel %vm751, %v1127, 0
        %v1134 = vsel %vm814, %v1129, 0
        %1136 = vmatprep.subr.bf16.mxu0 0
        %1137 = vmatpush1.bf16.msra.mxu0 %v1134
        %1138 = vmatprep.subr.bf16.mxu0 0
        %1139 = vmatpush1.bf16.msra.mxu0 0
        %1140 = vmatprep.subr.bf16.mxu0 0
        %1141 = vmatpush1.bf16.msra.mxu0 0
        %1142 = vmatprep.subr.bf16.mxu0 0
        %1143 = vmatpush1.bf16.msra.mxu0 0
        %1144 = vmatprep.subr.bf16.mxu0 0
        %1145 = vmatpush1.bf16.msra.mxu0 0
        %1146 = vmatprep.subr.bf16.mxu0 0
        %1147 = vmatpush1.bf16.msra.mxu0 0
        %1148 = vmatprep.subr.bf16.mxu0 0
        %1149 = vmatpush1.bf16.msra.mxu0 0
        %1150 = vmatprep.subr.bf16.mxu0 0
        %1151 = vmatpush1.bf16.msra.mxu0 0
        %1152 = vmatprep.subr.bf16.mxu0 0
        %1153 = vmatpush1.bf16.msra.mxu0 0
        %1154 = vmatprep.subr.bf16.mxu0 0
        %1155 = vmatpush1.bf16.msra.mxu0 0
        %1156 = vmatprep.subr.bf16.mxu0 0
        %1157 = vmatpush1.bf16.msra.mxu0 0
        %1158 = vmatprep.subr.bf16.mxu0 0
        %1159 = vmatpush1.bf16.msra.mxu0 0
        %1160 = vmatprep.subr.bf16.mxu0 0
        %1161 = vmatpush1.bf16.msra.mxu0 0
        %1162 = vmatprep.subr.bf16.mxu0 0
        %1163 = vmatpush1.bf16.msra.mxu0 0
        %1164 = vmatprep.subr.bf16.mxu0 0
        %1165 = vmatpush1.bf16.msra.mxu0 0
        %1166 = vmatprep.subr.bf16.mxu0 0
        %1167 = vmatpush1.bf16.msra.mxu0 0
        %1168 = vmatprep.mubr.bf16.mxu0 0
        %1169 = vmatmul.mubr.bf16.gmra.mrb[0].mxu0 %v1131
        %v1170 = vpop.f32.mrb[0].mxu0
        %v1171 = vadd.f32 0.0, %v1170
        %v1172 = vpop.f32.mrb[0].mxu0
        %v1173 = vpop.f32.mrb[0].mxu0
        %v1174 = vpop.f32.mrb[0].mxu0
        %1175 = vdwg.mxu0
        %v1176 = vpack.c.bf16 %v1171, %v1171
        %s1177 = scalar_lea.vmem %s7, 8
        %v1178 = vld [vmem:[%s1177] sm:$0xf]
        %v1180 = vsel %vm751, %v1176, 0
        %v1183 = vsel %vm814, %v1178, 0
        %1185 = vmatprep.subr.bf16.mxu0 0
        %1186 = vmatpush1.bf16.msra.mxu0 %v1183
        %1187 = vmatprep.subr.bf16.mxu0 0
        %1188 = vmatpush1.bf16.msra.mxu0 0
        %1189 = vmatprep.subr.bf16.mxu0 0
        %1190 = vmatpush1.bf16.msra.mxu0 0
        %1191 = vmatprep.subr.bf16.mxu0 0
        %1192 = vmatpush1.bf16.msra.mxu0 0
        %1193 = vmatprep.subr.bf16.mxu0 0
        %1194 = vmatpush1.bf16.msra.mxu0 0
        %1195 = vmatprep.subr.bf16.mxu0 0
        %1196 = vmatpush1.bf16.msra.mxu0 0
        %1197 = vmatprep.subr.bf16.mxu0 0
        %1198 = vmatpush1.bf16.msra.mxu0 0
        %1199 = vmatprep.subr.bf16.mxu0 0
        %1200 = vmatpush1.bf16.msra.mxu0 0
        %1201 = vmatprep.subr.bf16.mxu0 0
        %1202 = vmatpush1.bf16.msra.mxu0 0
        %1203 = vmatprep.subr.bf16.mxu0 0
        %1204 = vmatpush1.bf16.msra.mxu0 0
        %1205 = vmatprep.subr.bf16.mxu0 0
        %1206 = vmatpush1.bf16.msra.mxu0 0
        %1207 = vmatprep.subr.bf16.mxu0 0
        %1208 = vmatpush1.bf16.msra.mxu0 0
        %1209 = vmatprep.subr.bf16.mxu0 0
        %1210 = vmatpush1.bf16.msra.mxu0 0
        %1211 = vmatprep.subr.bf16.mxu0 0
        %1212 = vmatpush1.bf16.msra.mxu0 0
        %1213 = vmatprep.subr.bf16.mxu0 0
        %1214 = vmatpush1.bf16.msra.mxu0 0
        %1215 = vmatprep.subr.bf16.mxu0 0
        %1216 = vmatpush1.bf16.msra.mxu0 0
        %1217 = vmatprep.mubr.bf16.mxu0 0
        %1218 = vmatmul.mubr.bf16.gmra.mrb[0].mxu0 %v1180
        %v1219 = vpop.f32.mrb[0].mxu0
        %v1220 = vadd.f32 0.0, %v1219
        %v1221 = vpop.f32.mrb[0].mxu0
        %v1222 = vpop.f32.mrb[0].mxu0
        %v1223 = vpop.f32.mrb[0].mxu0
        %1224 = vdwg.mxu0
        %v1225 = vadd.f32 %v1061, %v1220
        %s1226 = scalar_lea.vmem [#allocation2], 12
        %v1227 = vld [vmem:[%s1226] sm:$0xf]
        %1228 = vrot.lane.b32.xlu0 %v749, 104
        %v1229 = vpop.permute.xlu0 %1228
        %v1231 = vsel %vm751, %v1229, 0
        %v1234 = vsel %vm751, %v1227, 0
        %1236 = vmatprep.subr.bf16.mxu0 0
        %1237 = vmatpush1.bf16.xpose.msra.mxu0 %v1234
        %1238 = vmatprep.subr.bf16.mxu0 0
        %1239 = vmatpush1.bf16.xpose.msra.mxu0 0
        %1240 = vmatprep.subr.bf16.mxu0 0
        %1241 = vmatpush1.bf16.xpose.msra.mxu0 0
        %1242 = vmatprep.subr.bf16.mxu0 0
        %1243 = vmatpush1.bf16.xpose.msra.mxu0 0
        %1244 = vmatprep.subr.bf16.mxu0 0
        %1245 = vmatpush1.bf16.xpose.msra.mxu0 0
        %1246 = vmatprep.subr.bf16.mxu0 0
        %1247 = vmatpush1.bf16.xpose.msra.mxu0 0
        %1248 = vmatprep.subr.bf16.mxu0 0
        %1249 = vmatpush1.bf16.xpose.msra.mxu0 0
        %1250 = vmatprep.subr.bf16.mxu0 0
        %1251 = vmatpush1.bf16.xpose.msra.mxu0 0
        %1252 = vmatprep.subr.bf16.mxu0 0
        %1253 = vmatpush1.bf16.xpose.msra.mxu0 0
        %1254 = vmatprep.subr.bf16.mxu0 0
        %1255 = vmatpush1.bf16.xpose.msra.mxu0 0
        %1256 = vmatprep.subr.bf16.mxu0 0
        %1257 = vmatpush1.bf16.xpose.msra.mxu0 0
        %1258 = vmatprep.subr.bf16.mxu0 0
        %1259 = vmatpush1.bf16.xpose.msra.mxu0 0
        %1260 = vmatprep.subr.bf16.mxu0 0
        %1261 = vmatpush1.bf16.xpose.msra.mxu0 0
        %1262 = vmatprep.subr.bf16.mxu0 0
        %1263 = vmatpush1.bf16.xpose.msra.mxu0 0
        %1264 = vmatprep.subr.bf16.mxu0 0
        %1265 = vmatpush1.bf16.xpose.msra.mxu0 0
        %1266 = vmatprep.subr.bf16.mxu0 0
        %1267 = vmatpush1.bf16.xpose.msra.mxu0 0
        %1268 = vmatprep.mubr.bf16.mxu0 0
        %1269 = vmatmul.mubr.bf16.gmra.mrb[0].mxu0 %v1231
        %v1270 = vpop.f32.mrb[0].mxu0
        %v1271 = vadd.f32 0.0, %v1270
        %v1272 = vpop.f32.mrb[0].mxu0
        %v1273 = vpop.f32.mrb[0].mxu0
        %v1274 = vpop.f32.mrb[0].mxu0
        %1275 = vdwg.mxu0
        %v1276 = vsel %vm751, %v1271, -inf
        %1277 = vmax.xlane.f32.xlu0 %v1276
        %v1278 = vpop.xlane.xlu0 %1277
        %v1279 = vsub.f32 %v1271, %v1278
        %v1280 = vmul.f32 %v1279, 1.442695
        %v1281 = vpow.pop %v1280
        %v1282 = vsel %vm751, %v1281, 0.0
        %1283 = vadd.xlane.f32.xlu0 %v1282
        %v1284 = vpop.xlane.xlu0 %1283
        %v1285 = vrcp.pop %v1284
        %v1286 = vmul.f32 %v1281, %v1285
        %v1287 = vpack.c.bf16 %v1286, %v1286
        %s1288 = scalar_lea.vmem [#allocation3], 12
        %v1289 = vld [vmem:[%s1288] sm:$0xf]
        %v1291 = vsel %vm751, %v1287, 0
        %v1294 = vsel %vm814, %v1289, 0
        %1296 = vmatprep.subr.bf16.mxu0 0
        %1297 = vmatpush1.bf16.msra.mxu0 %v1294
        %1298 = vmatprep.subr.bf16.mxu0 0
        %1299 = vmatpush1.bf16.msra.mxu0 0
        %1300 = vmatprep.subr.bf16.mxu0 0
        %1301 = vmatpush1.bf16.msra.mxu0 0
        %1302 = vmatprep.subr.bf16.mxu0 0
        %1303 = vmatpush1.bf16.msra.mxu0 0
        %1304 = vmatprep.subr.bf16.mxu0 0
        %1305 = vmatpush1.bf16.msra.mxu0 0
        %1306 = vmatprep.subr.bf16.mxu0 0
        %1307 = vmatpush1.bf16.msra.mxu0 0
        %1308 = vmatprep.subr.bf16.mxu0 0
        %1309 = vmatpush1.bf16.msra.mxu0 0
        %1310 = vmatprep.subr.bf16.mxu0 0
        %1311 = vmatpush1.bf16.msra.mxu0 0
        %1312 = vmatprep.subr.bf16.mxu0 0
        %1313 = vmatpush1.bf16.msra.mxu0 0
        %1314 = vmatprep.subr.bf16.mxu0 0
        %1315 = vmatpush1.bf16.msra.mxu0 0
        %1316 = vmatprep.subr.bf16.mxu0 0
        %1317 = vmatpush1.bf16.msra.mxu0 0
        %1318 = vmatprep.subr.bf16.mxu0 0
        %1319 = vmatpush1.bf16.msra.mxu0 0
        %1320 = vmatprep.subr.bf16.mxu0 0
        %1321 = vmatpush1.bf16.msra.mxu0 0
        %1322 = vmatprep.subr.bf16.mxu0 0
        %1323 = vmatpush1.bf16.msra.mxu0 0
        %1324 = vmatprep.subr.bf16.mxu0 0
        %1325 = vmatpush1.bf16.msra.mxu0 0
        %1326 = vmatprep.subr.bf16.mxu0 0
        %1327 = vmatpush1.bf16.msra.mxu0 0
        %1328 = vmatprep.mubr.bf16.mxu0 0
        %1329 = vmatmul.mubr.bf16.gmra.mrb[0].mxu0 %v1291
        %v1330 = vpop.f32.mrb[0].mxu0
        %v1331 = vadd.f32 0.0, %v1330
        %v1332 = vpop.f32.mrb[0].mxu0
        %v1333 = vpop.f32.mrb[0].mxu0
        %v1334 = vpop.f32.mrb[0].mxu0
        %1335 = vdwg.mxu0
        %v1336 = vpack.c.bf16 %v1331, %v1331
        %s1337 = scalar_lea.vmem %s7, 12
        %v1338 = vld [vmem:[%s1337] sm:$0xf]
        %v1340 = vsel %vm751, %v1336, 0
        %v1343 = vsel %vm814, %v1338, 0
        %1345 = vmatprep.subr.bf16.mxu0 0
        %1346 = vmatpush1.bf16.msra.mxu0 %v1343
        %1347 = vmatprep.subr.bf16.mxu0 0
        %1348 = vmatpush1.bf16.msra.mxu0 0
        %1349 = vmatprep.subr.bf16.mxu0 0
        %1350 = vmatpush1.bf16.msra.mxu0 0
        %1351 = vmatprep.subr.bf16.mxu0 0
        %1352 = vmatpush1.bf16.msra.mxu0 0
        %1353 = vmatprep.subr.bf16.mxu0 0
        %1354 = vmatpush1.bf16.msra.mxu0 0
        %1355 = vmatprep.subr.bf16.mxu0 0
        %1356 = vmatpush1.bf16.msra.mxu0 0
        %1357 = vmatprep.subr.bf16.mxu0 0
        %1358 = vmatpush1.bf16.msra.mxu0 0
        %1359 = vmatprep.subr.bf16.mxu0 0
        %1360 = vmatpush1.bf16.msra.mxu0 0
        %1361 = vmatprep.subr.bf16.mxu0 0
        %1362 = vmatpush1.bf16.msra.mxu0 0
        %1363 = vmatprep.subr.bf16.mxu0 0
        %1364 = vmatpush1.bf16.msra.mxu0 0
        %1365 = vmatprep.subr.bf16.mxu0 0
        %1366 = vmatpush1.bf16.msra.mxu0 0
        %1367 = vmatprep.subr.bf16.mxu0 0
        %1368 = vmatpush1.bf16.msra.mxu0 0
        %1369 = vmatprep.subr.bf16.mxu0 0
        %1370 = vmatpush1.bf16.msra.mxu0 0
        %1371 = vmatprep.subr.bf16.mxu0 0
        %1372 = vmatpush1.bf16.msra.mxu0 0
        %1373 = vmatprep.subr.bf16.mxu0 0
        %1374 = vmatpush1.bf16.msra.mxu0 0
        %1375 = vmatprep.subr.bf16.mxu0 0
        %1376 = vmatpush1.bf16.msra.mxu0 0
        %1377 = vmatprep.mubr.bf16.mxu0 0
        %1378 = vmatmul.mubr.bf16.gmra.mrb[0].mxu0 %v1340
        %v1379 = vpop.f32.mrb[0].mxu0
        %v1380 = vadd.f32 0.0, %v1379
        %v1381 = vpop.f32.mrb[0].mxu0
        %v1382 = vpop.f32.mrb[0].mxu0
        %v1383 = vpop.f32.mrb[0].mxu0
        %1384 = vdwg.mxu0
        %v1385 = vadd.f32 %v1225, %v1380
        %v1386 = vadd.f32 %v650, %v1385
        %v1387 = vld [vmem:[%s8] sm:$0x1]
        %v1389 = vlaneseq
        %v1390 = vshrl.u32 %v1389, 7
        %v1391 = vsub.s32 0, %v1390
        %v1392 = vrot.slane %v1387, %v1391
        %v1394 = vadd.f32 %v1386, %v1392
        %v1395 = vld [vmem:[%s9] sm:$0x1]
        %v1396 = vld [vmem:[%s10] sm:$0x1]
        %v1397 = vsel %vm653, %v1394, 0.0
        %1398 = vadd.xlane.f32.xlu0 %v1397
        %v1399 = vpop.xlane.xlu0 %1398
        %v1400 = vmul.f32 %v1399, %v657
        %v1401 = vsub.f32 %v1394, %v1400
        %v1402 = vmul.f32 %v1401, %v1401
        %v1403 = vsel %vm653, %v1402, 0.0
        %1404 = vadd.xlane.f32.xlu0 %v1403
        %v1405 = vpop.xlane.xlu0 %1404
        %v1406 = vmul.f32 %v1405, %v657
        %v1407 = vadd.f32 %v1406, 1e-05
        %v1408 = vrsqrt.pop %v1407
        %v1409 = vmul.f32 %v1401, %v1408
        %v1411 = vlaneseq
        %v1412 = vshrl.u32 %v1411, 7
        %v1413 = vsub.s32 0, %v1412
        %v1414 = vrot.slane %v1395, %v1413
        %v1416 = vmul.f32 %v1409, %v1414
        %v1418 = vlaneseq
        %v1419 = vshrl.u32 %v1418, 7
        %v1420 = vsub.s32 0, %v1419
        %v1421 = vrot.slane %v1396, %v1420
        %v1423 = vadd.f32 %v1416, %v1421
        %v1424 = vpack.c.bf16 %v1423, %v1423
        %v1425 = vld [vmem:[%s11] sm:$0xf]
        %v1426 = vld [vmem:[%s11 + $0x4] sm:$0xf]
        %v1427 = vld [vmem:[%s11 + $0x8] sm:$0xf]
        %v1428 = vld [vmem:[%s11 + $0xc] sm:$0xf]
        %v1429 = vld [vmem:[%s12] sm:$0x1]
        %v1431 = vlaneseq
        %v1432 = vshrl.u32 %v1431, 7
        %v1433 = vsub.s32 0, %v1432
        %v1434 = vrot.slane %v1429, %v1433
        %v1440 = vunpack.c.l.b16 %v1425
        %v1441 = vunpack.c.l.b16 %v1426
        %v1442 = vunpack.c.l.b16 %v1427
        %v1443 = vunpack.c.l.b16 %v1428
        %v1444 = vpack.c.b16 %v1441, %v1440
        %v1445 = vpack.c.b16 %v1443, %v1442
        %v1449 = vsel %vm653, %v1424, 0
        %1451 = vmatprep.subr.bf16.mxu0 0
        %1452 = vmatpush1.bf16.msra.mxu0 %v1444
        %1453 = vmatprep.subr.bf16.mxu0 0
        %1454 = vmatpush1.bf16.msra.mxu0 %v1445
        %1455 = vmatprep.subr.bf16.mxu0 0
        %1456 = vmatpush1.bf16.msra.mxu0 0
        %1457 = vmatprep.subr.bf16.mxu0 0
        %1458 = vmatpush1.bf16.msra.mxu0 0
        %1459 = vmatprep.subr.bf16.mxu0 0
        %1460 = vmatpush1.bf16.msra.mxu0 0
        %1461 = vmatprep.subr.bf16.mxu0 0
        %1462 = vmatpush1.bf16.msra.mxu0 0
        %1463 = vmatprep.subr.bf16.mxu0 0
        %1464 = vmatpush1.bf16.msra.mxu0 0
        %1465 = vmatprep.subr.bf16.mxu0 0
        %1466 = vmatpush1.bf16.msra.mxu0 0
        %1467 = vmatprep.subr.bf16.mxu0 0
        %1468 = vmatpush1.bf16.msra.mxu0 0
        %1469 = vmatprep.subr.bf16.mxu0 0
        %1470 = vmatpush1.bf16.msra.mxu0 0
        %1471 = vmatprep.subr.bf16.mxu0 0
        %1472 = vmatpush1.bf16.msra.mxu0 0
        %1473 = vmatprep.subr.bf16.mxu0 0
        %1474 = vmatpush1.bf16.msra.mxu0 0
        %1475 = vmatprep.subr.bf16.mxu0 0
        %1476 = vmatpush1.bf16.msra.mxu0 0
        %1477 = vmatprep.subr.bf16.mxu0 0
        %1478 = vmatpush1.bf16.msra.mxu0 0
        %1479 = vmatprep.subr.bf16.mxu0 0
        %1480 = vmatpush1.bf16.msra.mxu0 0
        %1481 = vmatprep.subr.bf16.mxu0 0
        %1482 = vmatpush1.bf16.msra.mxu0 0
        %1483 = vmatprep.mubr.bf16.mxu0 0
        %1484 = vmatmul.mubr.bf16.gmra.mrb[0].mxu0 %v1449
        %v1485 = vpop.f32.mrb[0].mxu0
        %v1486 = vadd.f32 %v1434, %v1485
        %v1487 = vpop.f32.mrb[0].mxu0
        %v1488 = vpop.f32.mrb[0].mxu0
        %v1489 = vpop.f32.mrb[0].mxu0
        %1490 = vdwg.mxu0
        %v1491 = vmul.f32 %v1486, 0.5
        %v1492 = vmul.f32 %v1486, 0.70710677
        %v1493 = verf.f32.pop %v1492
        %v1494 = vadd.f32 %v1493, 1.0
        %v1495 = vmul.f32 %v1491, %v1494
        %v1496 = vpack.c.bf16 %v1495, %v1495
        %v1497 = vld [vmem:[%s13] sm:$0xf]
        %v1498 = vld [vmem:[%s13 + $0x4] sm:$0xf]
        %v1499 = vld [vmem:[%s13 + $0x8] sm:$0xf]
        %v1500 = vld [vmem:[%s13 + $0xc] sm:$0xf]
        %v1501 = vld [vmem:[%s13 + $0x10] sm:$0xf]
        %v1502 = vld [vmem:[%s13 + $0x14] sm:$0xf]
        %v1503 = vld [vmem:[%s13 + $0x18] sm:$0xf]
        %v1504 = vld [vmem:[%s13 + $0x1c] sm:$0xf]
        %v1505 = vld [vmem:[%s13 + $0x20] sm:$0xf]
        %v1506 = vld [vmem:[%s13 + $0x24] sm:$0xf]
        %v1507 = vld [vmem:[%s13 + $0x28] sm:$0xf]
        %v1508 = vld [vmem:[%s13 + $0x2c] sm:$0xf]
        %v1509 = vld [vmem:[%s13 + $0x30] sm:$0xf]
        %v1510 = vld [vmem:[%s13 + $0x34] sm:$0xf]
        %v1511 = vld [vmem:[%s13 + $0x38] sm:$0xf]
        %v1512 = vld [vmem:[%s13 + $0x3c] sm:$0xf]
        %v1513 = vld [vmem:[%s14] sm:$0x1]
        %v1515 = vlaneseq
        %v1516 = vshrl.u32 %v1515, 7
        %v1517 = vsub.s32 0, %v1516
        %v1518 = vrot.slane %v1513, %v1517
        %v1536 = vunpack.c.l.b16 %v1497
        %v1537 = vunpack.c.l.b16 %v1498
        %v1538 = vunpack.c.l.b16 %v1499
        %v1539 = vunpack.c.l.b16 %v1500
        %v1540 = vunpack.c.l.b16 %v1501
        %v1541 = vunpack.c.l.b16 %v1502
        %v1542 = vunpack.c.l.b16 %v1503
        %v1543 = vunpack.c.l.b16 %v1504
        %v1544 = vunpack.c.l.b16 %v1505
        %v1545 = vunpack.c.l.b16 %v1506
        %v1546 = vunpack.c.l.b16 %v1507
        %v1547 = vunpack.c.l.b16 %v1508
        %v1548 = vunpack.c.l.b16 %v1509
        %v1549 = vunpack.c.l.b16 %v1510
        %v1550 = vunpack.c.l.b16 %v1511
        %v1551 = vunpack.c.l.b16 %v1512
        %v1552 = vpack.c.b16 %v1537, %v1536
        %v1553 = vpack.c.b16 %v1539, %v1538
        %v1554 = vpack.c.b16 %v1541, %v1540
        %v1555 = vpack.c.b16 %v1543, %v1542
        %v1556 = vpack.c.b16 %v1545, %v1544
        %v1557 = vpack.c.b16 %v1547, %v1546
        %v1558 = vpack.c.b16 %v1549, %v1548
        %v1559 = vpack.c.b16 %v1551, %v1550
        %1568 = vmatprep.subr.bf16.mxu0 0
        %1569 = vmatpush1.bf16.msra.mxu0 %v1552
        %1570 = vmatprep.subr.bf16.mxu0 0
        %1571 = vmatpush1.bf16.msra.mxu0 %v1553
        %1572 = vmatprep.subr.bf16.mxu0 0
        %1573 = vmatpush1.bf16.msra.mxu0 %v1554
        %1574 = vmatprep.subr.bf16.mxu0 0
        %1575 = vmatpush1.bf16.msra.mxu0 %v1555
        %1576 = vmatprep.subr.bf16.mxu0 0
        %1577 = vmatpush1.bf16.msra.mxu0 %v1556
        %1578 = vmatprep.subr.bf16.mxu0 0
        %1579 = vmatpush1.bf16.msra.mxu0 %v1557
        %1580 = vmatprep.subr.bf16.mxu0 0
        %1581 = vmatpush1.bf16.msra.mxu0 %v1558
        %1582 = vmatprep.subr.bf16.mxu0 0
        %1583 = vmatpush1.bf16.msra.mxu0 %v1559
        %1584 = vmatprep.subr.bf16.mxu0 0
        %1585 = vmatpush1.bf16.msra.mxu0 0
        %1586 = vmatprep.subr.bf16.mxu0 0
        %1587 = vmatpush1.bf16.msra.mxu0 0
        %1588 = vmatprep.subr.bf16.mxu0 0
        %1589 = vmatpush1.bf16.msra.mxu0 0
        %1590 = vmatprep.subr.bf16.mxu0 0
        %1591 = vmatpush1.bf16.msra.mxu0 0
        %1592 = vmatprep.subr.bf16.mxu0 0
        %1593 = vmatpush1.bf16.msra.mxu0 0
        %1594 = vmatprep.subr.bf16.mxu0 0
        %1595 = vmatpush1.bf16.msra.mxu0 0
        %1596 = vmatprep.subr.bf16.mxu0 0
        %1597 = vmatpush1.bf16.msra.mxu0 0
        %1598 = vmatprep.subr.bf16.mxu0 0
        %1599 = vmatpush1.bf16.msra.mxu0 0
        %1600 = vmatprep.mubr.bf16.mxu0 0
        %1601 = vmatmul.mubr.bf16.gmra.mrb[0].mxu0 %v1496
        %v1602 = vpop.f32.mrb[0].mxu0
        %v1603 = vadd.f32 %v1518, %v1602
        %v1604 = vpop.f32.mrb[0].mxu0
        %v1605 = vpop.f32.mrb[0].mxu0
        %v1606 = vpop.f32.mrb[0].mxu0
        %1607 = vdwg.mxu0
        %v1608 = vadd.f32 %v1394, %v1603
        %1609 = vst.msk [vmem:[%s499] sm:$0xff] %vm653, %v1608
        %s1610 = sand.u32 %s371, 1
        %s1611 = scalar_lea.sflag [#allocation5], %s1610
        %s1612 = sand.u32 %s371, 1
        %s1613 = smul.addr %s1612, 8
        %s1614 = scalar_lea.vmem [#allocation4], %s1613
        // Predicated region
        $region85: #{tpu_custom_call.1} parent=79 // pred_check
          %p1615 = pneg %p381
        $region86: #{tpu_custom_call.1} parent=79 // pred_check_branch
          %1617 = sbr.rel (%p1615) target = $region88
        $region87: #{tpu_custom_call.1} parent=79 // pred_region
          %s1619 = ssub.s32 128, 128
          %1620 = vsyncadd %s1611, %s1619
          %s1621 = sadd.s32 %s34, %s33
          %s1622 = smul.addr %s1621, 128
          %s1623 = scalar_lea.hbm %s15, %s1622
          %s1625 = sshll.u32 %s1614, 4
          %s1626 = int_to_ptr.vmem [resolvable:$true] %s1625
          %1628 = dma.vmem_to_hbm [thread:$0]  %s1626, 128, %s1623, %s1611
        $region88: #{tpu_custom_call.1} parent=79 // pred_fallthru
          _
      $region80: #{tpu_custom_call.1} parent=5 // pred_fallthru
        _
      %p1629 = scmp.le.s32.totalorder 2, %s24
      // Predicated region
      $region89: #{tpu_custom_call.1} parent=5 // pred_check
        %p1630 = pneg %p1629
      $region90: #{tpu_custom_call.1} parent=5 // pred_check_branch
        %1632 = sbr.rel (%p1630) target = $region92
      $region91: #{tpu_custom_call.1} parent=5 // pred_region
        %s1633 = ssub.s32 %s24, 2
        // Predicated region
        $region93: #{tpu_custom_call.1} parent=91 // pred_check
          %p1634 = pneg %p387
        $region94: #{tpu_custom_call.1} parent=91 // pred_check_branch
          %1636 = sbr.rel (%p1634) target = $region96
        $region95: #{tpu_custom_call.1} parent=91 // pred_region
          %s1637 = sand.u32 %s372, 1
          %s1638 = scalar_lea.sflag [#allocation5], %s1637
          %s1639 = sand.u32 %s372, 1
          %s1640 = smul.addr %s1639, 8
          %s1641 = scalar_lea.vmem [#allocation4], %s1640
          %1642 = dma.done %s1638, 128
        $region96: #{tpu_custom_call.1} parent=91 // pred_fallthru
          _
      $region92: #{tpu_custom_call.1} parent=5 // pred_fallthru
        _
    $region6: #{tpu_custom_call.1} parent=1 // loop_footer
      %s28 = sadd.s32 1, %s24
    $region7: #{tpu_custom_call.1} parent=1 // loop_footer_branch
      %23 = sbr.rel target = $region3
    $region8: #{tpu_custom_call.1} parent=1 // loop_exit
      _
    %1643 = vsyncpa [#allocation5], 1
    %s1644 = scalar_lea.sflag [#allocation5], 1
    %1645 = vsyncpa %s1644, 1

</llo_original>
